<compile_context>
chip_gen: v5e
topology: v5e:2x2
jax: 0.10.0
libtpu: 0.0.40
codegen_flags: <defaults>
</compile_context>

<pallas_src>
import functools

import jax
import jax.numpy as jnp
from jax.experimental import pallas as pl
from jax.experimental.pallas import tpu as pltpu


def _lane_shift(a, k):
    """Circular shift along the last (lane) axis: result[..., p] = a[..., p + k].

    Static lane slices + concat (exact jnp.roll(a, -k) semantics); Mosaic lowers
    this to in-register lane rotations (XLU), no VMEM round-trip.
    """
    if k == 0:
        return a
    return jnp.concatenate([a[..., k:], a[..., :k]], axis=-1)


def _conv3x3_reflect(p, wmat, bias, masks, H, W):
    """3x3 conv, stride 1, ReflectionPad2d(1), on lane-dense flattened planes.

    p:     (C_in, H*W) f32   activation planes (spatial flattened onto lanes)
    wmat:  (C_out, 9*C_in)   weights, column index t = (ky*3 + kx)*C_in + ci
    bias:  (C_out, 1)
    masks: (first_row, last_row, first_col, last_col), each (C_in, H*W) bool
    returns (C_out, H*W) f32
    """
    c_in, hw = p.shape
    c_out = wmat.shape[0]
    first_row, last_row, first_col, last_col = masks

    def shift_rows(a, dy):
        # a[c, y, x] -> a[c, reflect(y + dy), x]   (reflect: -1 -> 1, H -> H-2)
        if dy == 0:
            return a
        below = _lane_shift(a, W)     # reads row y + 1
        above = _lane_shift(a, -W)    # reads row y - 1
        if dy > 0:
            return jnp.where(last_row, above, below)
        return jnp.where(first_row, below, above)

    def shift_cols(a, dx):
        # a[c, y, x] -> a[c, y, reflect(x + dx)]   (reflect: -1 -> 1, W -> W-2)
        if dx == 0:
            return a
        right = _lane_shift(a, 1)     # reads col x + 1
        left = _lane_shift(a, -1)     # reads col x - 1
        if dx > 0:
            return jnp.where(last_col, left, right)
        return jnp.where(first_col, right, left)

    # Accumulator starts as the broadcast bias (saves a full H*W*C VPU pass).
    acc = jnp.broadcast_to(bias, (c_out, hw)).astype(jnp.float32)

    for ky, dy in enumerate((-1, 0, 1)):
        r = shift_rows(p, dy)                       # (C_in, H*W) row tap
        for kx, dx in enumerate((-1, 0, 1)):
            t = shift_cols(r, dx)                   # (C_in, H*W) full (dy, dx) tap
            base = (ky * 3 + kx) * c_in
            # Channel mix on the VPU: C_in outer-product MACs per tap.
            # (For dim >= ~128 replace with a single im2col MXU contraction.)
            for ci in range(c_in):
                w_col = wmat[:, base + ci:base + ci + 1]   # (C_out, 1)
                acc = acc + w_col * t[ci:ci + 1, :]        # (C_out, H*W)
    return acc


def _resnet_block_kernel(rc_ref, x_ref, w1_ref, b1_ref, w2_ref, b2_ref, o_ref,
                         *, H, W):
    C, HW = x_ref.shape
    # Reflection boundary masks, built once per grid step from the resident
    # (2, H*W) int32 row/col index table (int broadcast + compare: VPU only).
    row = jnp.broadcast_to(rc_ref[0:1, :], (C, HW))
    col = jnp.broadcast_to(rc_ref[1:2, :], (C, HW))
    masks = (row == 0, row == H - 1, col == 0, col == W - 1)

    x = x_ref[...].astype(jnp.float32)                      # (C, H*W)
    w1 = w1_ref[...]
    w2 = w2_ref[...]

    h = _conv3x3_reflect(x, w1, b1_ref[...], masks, H, W)   # conv1 (+ bias)
    h = jnp.maximum(h, 0.0)                                 # ReLU(inplace=True)
    # TODO(synk): nn.Dropout(0.5) (only present when use_dropout=True) is not modeled.
    y = _conv3x3_reflect(h, w2, b2_ref[...], masks, H, W)   # conv2 (+ bias)
    o_ref[...] = (x + y).astype(o_ref.dtype)                # skip connection


def resnet_block(x_nchw, w1_oihw, b1, w2_oihw, b2):
    """ResnetBlock forward.  x: (N,C,H,W) f32; w*: (C,C,3,3) OIHW; b*: (C,)."""
    N, C, H, W = x_nchw.shape
    HW = H * W
    assert H >= 2 and W >= 2, "ReflectionPad2d(1) requires H, W >= 2"

    # Free, contiguity-preserving reshape: NCHW -> per-image (C, H*W) lane-dense planes.
    x = x_nchw.reshape(N, C, HW)

    # OIHW -> (C_out, 9*C_in), column index (ky*3 + kx)*C_in + ci  (tiny, one-off).
    w1m = jnp.transpose(w1_oihw, (0, 2, 3, 1)).reshape(C, 9 * C)
    w2m = jnp.transpose(w2_oihw, (0, 2, 3, 1)).reshape(C, 9 * C)
    b1m = b1.reshape(C, 1)
    b2m = b2.reshape(C, 1)

    # (2, H*W) int32 row/col index of every flattened spatial position
    # (used in-kernel for the reflection boundary selects).
    pos = jnp.arange(HW, dtype=jnp.int32)
    rc = jnp.stack([pos // W, pos % W]).astype(jnp.int32)

    kernel = functools.partial(_resnet_block_kernel, H=H, W=W)
    const2 = lambda n: (0, 0)   # resident blocks: weights / bias / index table

    out = pl.pallas_call(
        kernel,
        out_shape=jax.ShapeDtypeStruct((N, C, HW), x_nchw.dtype),
        grid=(N,),
        in_specs=[
            pl.BlockSpec((2, HW), const2),                       # rc ids (resident)
            pl.BlockSpec((None, C, HW), lambda n: (n, 0, 0)),    # x planes
            pl.BlockSpec((C, 9 * C), const2),                    # w1 (resident)
            pl.BlockSpec((C, 1), const2),                        # b1 (resident)
            pl.BlockSpec((C, 9 * C), const2),                    # w2 (resident)
            pl.BlockSpec((C, 1), const2),                        # b2 (resident)
        ],
        out_specs=pl.BlockSpec((None, C, HW), lambda n: (n, 0, 0)),
        compiler_params=pltpu.CompilerParams(
            dimension_semantics=("parallel",),    # N=2 -> both v7x TCs busy
            vmem_limit_bytes=32 * 1024 * 1024,
        ),
    )(rc, x, w1m, b1m, w2m, b2m)

    return out.reshape(N, C, H, W)


def _reference(x_nchw, w1_oihw, b1, w2_oihw, b2):
    """Pure-JAX reference of the same forward pass (sanity check)."""
    x = jnp.transpose(x_nchw, (0, 2, 3, 1))
    w1 = jnp.transpose(w1_oihw, (2, 3, 1, 0))
    w2 = jnp.transpose(w2_oihw, (2, 3, 1, 0))
    dn = ("NHWC", "HWIO", "NHWC")

    def conv(a, w, b):
        ap = jnp.pad(a, ((0, 0), (1, 1), (1, 1), (0, 0)), mode="reflect")
        return jax.lax.conv_general_dilated(
            ap, w, (1, 1), "VALID", dimension_numbers=dn) + b

    h = jax.nn.relu(conv(x, w1, b1))
    y = conv(h, w2, b2)
    return jnp.transpose(x + y, (0, 3, 1, 2))


if __name__ == "__main__":
    # ResnetBlock(dim=4, padding_type='reflect', use_dropout=False, use_bias=True)
    N, C, H, W = 2, 4, 16, 16
    key = jax.random.PRNGKey(0)
    kx, kw1, kb1, kw2, kb2 = jax.random.split(key, 5)

    x = jax.random.normal(kx, (N, C, H, W), dtype=jnp.float32)
    w1 = jax.random.normal(kw1, (C, C, 3, 3), dtype=jnp.float32) * 0.1
    b1 = jax.random.normal(kb1, (C,), dtype=jnp.float32) * 0.1
    w2 = jax.random.normal(kw2, (C, C, 3, 3), dtype=jnp.float32) * 0.1
    b2 = jax.random.normal(kb2, (C,), dtype=jnp.float32) * 0.1

    out = jax.jit(resnet_block)(x, w1, b1, w2, b2)
    out = jax.block_until_ready(out)

    ref = _reference(x, w1, b1, w2, b2)
    assert out.shape == (N, C, H, W)
    assert jnp.allclose(out, ref, atol=1e-4, rtol=1e-4), "mismatch vs reference"

    print("KERNEL_OK")
</pallas_src>

<mosaic_0001>
module attributes {stable_mosaic.version = 11 : i64} {
  func.func @_resnet_block_kernel(%arg0: i32, %arg1: memref<2x256xi32, #tpu.memory_space<vmem>>, %arg2: memref<1x4x256xf32, #tpu.memory_space<vmem>>, %arg3: memref<4x36xf32, #tpu.memory_space<vmem>>, %arg4: memref<4x1xf32, #tpu.memory_space<vmem>>, %arg5: memref<4x36xf32, #tpu.memory_space<vmem>>, %arg6: memref<4x1xf32, #tpu.memory_space<vmem>>, %arg7: memref<1x4x256xf32, #tpu.memory_space<vmem>>) attributes {dimension_semantics = [#tpu.dimension_semantics<parallel>], iteration_bounds = array<i64: 2>, scalar_prefetch = 0 : i64, scratch_operands = 0 : i64, tpu.core_type = #tpu.core_type<tc>, window_params = [{pipeline_mode = #tpu.pipeline_mode<synchronous>, transform_indices = @transform_0, window_bounds = array<i64: 2, 256>}, {transform_indices = @transform_1, window_bounds = array<i64: 1, 4, 256>}, {pipeline_mode = #tpu.pipeline_mode<synchronous>, transform_indices = @transform_2, window_bounds = array<i64: 4, 36>}, {pipeline_mode = #tpu.pipeline_mode<synchronous>, transform_indices = @transform_3, window_bounds = array<i64: 4, 1>}, {pipeline_mode = #tpu.pipeline_mode<synchronous>, transform_indices = @transform_4, window_bounds = array<i64: 4, 36>}, {pipeline_mode = #tpu.pipeline_mode<synchronous>, transform_indices = @transform_5, window_bounds = array<i64: 4, 1>}, {transform_indices = @transform_6, window_bounds = array<i64: 1, 4, 256>}]} {
    %c0 = arith.constant 0 : index
    %c0_0 = arith.constant 0 : index
    %0 = vector.load %arg1[%c0, %c0_0] : memref<2x256xi32, #tpu.memory_space<vmem>>, vector<1x256xi32>
    %1 = vector.shape_cast %0 : vector<1x256xi32> to vector<1x256xi32>
    %2 = vector.broadcast %1 : vector<1x256xi32> to vector<4x256xi32>
    %c1 = arith.constant 1 : index
    %c0_1 = arith.constant 0 : index
    %3 = vector.load %arg1[%c1, %c0_1] : memref<2x256xi32, #tpu.memory_space<vmem>>, vector<1x256xi32>
    %4 = vector.shape_cast %3 : vector<1x256xi32> to vector<1x256xi32>
    %5 = vector.broadcast %4 : vector<1x256xi32> to vector<4x256xi32>
    %c0_i32 = arith.constant 0 : i32
    %6 = vector.broadcast %c0_i32 : i32 to vector<4x256xi32>
    %7 = arith.cmpi eq, %2, %6 : vector<4x256xi32>
    %c15_i32 = arith.constant 15 : i32
    %8 = vector.broadcast %c15_i32 : i32 to vector<4x256xi32>
    %9 = arith.cmpi eq, %2, %8 : vector<4x256xi32>
    %c0_i32_2 = arith.constant 0 : i32
    %10 = vector.broadcast %c0_i32_2 : i32 to vector<4x256xi32>
    %11 = arith.cmpi eq, %5, %10 : vector<4x256xi32>
    %c15_i32_3 = arith.constant 15 : i32
    %12 = vector.broadcast %c15_i32_3 : i32 to vector<4x256xi32>
    %13 = arith.cmpi eq, %5, %12 : vector<4x256xi32>
    %c0_4 = arith.constant 0 : index
    %c0_5 = arith.constant 0 : index
    %c0_6 = arith.constant 0 : index
    %14 = vector.load %arg2[%c0_4, %c0_5, %c0_6] : memref<1x4x256xf32, #tpu.memory_space<vmem>>, vector<1x4x256xf32>
    %15 = vector.shape_cast %14 : vector<1x4x256xf32> to vector<4x256xf32>
    %c0_7 = arith.constant 0 : index
    %c0_8 = arith.constant 0 : index
    %16 = vector.load %arg3[%c0_7, %c0_8] : memref<4x36xf32, #tpu.memory_space<vmem>>, vector<4x36xf32>
    %c0_9 = arith.constant 0 : index
    %c0_10 = arith.constant 0 : index
    %17 = vector.load %arg5[%c0_9, %c0_10] : memref<4x36xf32, #tpu.memory_space<vmem>>, vector<4x36xf32>
    %c0_11 = arith.constant 0 : index
    %c0_12 = arith.constant 0 : index
    %18 = vector.load %arg4[%c0_11, %c0_12] : memref<4x1xf32, #tpu.memory_space<vmem>>, vector<4x1xf32>
    %19 = vector.shape_cast %18 : vector<4x1xf32> to vector<4x1xf32>
    %20 = vector.broadcast %19 : vector<4x1xf32> to vector<4x256xf32>
    %21 = vector.extract_strided_slice %15 {offsets = [0, 16], sizes = [4, 240], strides = [1, 1]} : vector<4x256xf32> to vector<4x240xf32>
    %22 = vector.extract_strided_slice %15 {offsets = [0, 0], sizes = [4, 16], strides = [1, 1]} : vector<4x256xf32> to vector<4x16xf32>
    %23 = tpu.concatenate %21, %22 in 1 : vector<4x240xf32>, vector<4x16xf32> -> vector<4x256xf32>
    %24 = vector.extract_strided_slice %15 {offsets = [0, 240], sizes = [4, 16], strides = [1, 1]} : vector<4x256xf32> to vector<4x16xf32>
    %25 = vector.extract_strided_slice %15 {offsets = [0, 0], sizes = [4, 240], strides = [1, 1]} : vector<4x256xf32> to vector<4x240xf32>
    %26 = tpu.concatenate %24, %25 in 1 : vector<4x16xf32>, vector<4x240xf32> -> vector<4x256xf32>
    %27 = arith.select %7, %23, %26 : vector<4x256xi1>, vector<4x256xf32>
    %28 = vector.extract_strided_slice %27 {offsets = [0, 1], sizes = [4, 255], strides = [1, 1]} : vector<4x256xf32> to vector<4x255xf32>
    %29 = vector.extract_strided_slice %27 {offsets = [0, 0], sizes = [4, 1], strides = [1, 1]} : vector<4x256xf32> to vector<4x1xf32>
    %30 = tpu.concatenate %28, %29 in 1 : vector<4x255xf32>, vector<4x1xf32> -> vector<4x256xf32>
    %31 = vector.extract_strided_slice %27 {offsets = [0, 255], sizes = [4, 1], strides = [1, 1]} : vector<4x256xf32> to vector<4x1xf32>
    %32 = vector.extract_strided_slice %27 {offsets = [0, 0], sizes = [4, 255], strides = [1, 1]} : vector<4x256xf32> to vector<4x255xf32>
    %33 = tpu.concatenate %31, %32 in 1 : vector<4x1xf32>, vector<4x255xf32> -> vector<4x256xf32>
    %34 = arith.select %11, %30, %33 : vector<4x256xi1>, vector<4x256xf32>
    %35 = vector.extract_strided_slice %16 {offsets = [0, 0], sizes = [4, 1], strides = [1, 1]} : vector<4x36xf32> to vector<4x1xf32>
    %36 = vector.extract_strided_slice %34 {offsets = [0, 0], sizes = [1, 256], strides = [1, 1]} : vector<4x256xf32> to vector<1x256xf32>
    %37 = vector.broadcast %35 : vector<4x1xf32> to vector<4x256xf32>
    %38 = vector.broadcast %36 : vector<1x256xf32> to vector<4x256xf32>
    %39 = arith.mulf %37, %38 : vector<4x256xf32>
    %40 = arith.addf %20, %39 : vector<4x256xf32>
    %41 = vector.extract_strided_slice %16 {offsets = [0, 1], sizes = [4, 1], strides = [1, 1]} : vector<4x36xf32> to vector<4x1xf32>
    %42 = vector.extract_strided_slice %34 {offsets = [1, 0], sizes = [1, 256], strides = [1, 1]} : vector<4x256xf32> to vector<1x256xf32>
    %43 = vector.broadcast %41 : vector<4x1xf32> to vector<4x256xf32>
    %44 = vector.broadcast %42 : vector<1x256xf32> to vector<4x256xf32>
    %45 = arith.mulf %43, %44 : vector<4x256xf32>
    %46 = arith.addf %40, %45 : vector<4x256xf32>
    %47 = vector.extract_strided_slice %16 {offsets = [0, 2], sizes = [4, 1], strides = [1, 1]} : vector<4x36xf32> to vector<4x1xf32>
    %48 = vector.extract_strided_slice %34 {offsets = [2, 0], sizes = [1, 256], strides = [1, 1]} : vector<4x256xf32> to vector<1x256xf32>
    %49 = vector.broadcast %47 : vector<4x1xf32> to vector<4x256xf32>
    %50 = vector.broadcast %48 : vector<1x256xf32> to vector<4x256xf32>
    %51 = arith.mulf %49, %50 : vector<4x256xf32>
    %52 = arith.addf %46, %51 : vector<4x256xf32>
    %53 = vector.extract_strided_slice %16 {offsets = [0, 3], sizes = [4, 1], strides = [1, 1]} : vector<4x36xf32> to vector<4x1xf32>
    %54 = vector.extract_strided_slice %34 {offsets = [3, 0], sizes = [1, 256], strides = [1, 1]} : vector<4x256xf32> to vector<1x256xf32>
    %55 = vector.broadcast %53 : vector<4x1xf32> to vector<4x256xf32>
    %56 = vector.broadcast %54 : vector<1x256xf32> to vector<4x256xf32>
    %57 = arith.mulf %55, %56 : vector<4x256xf32>
    %58 = arith.addf %52, %57 : vector<4x256xf32>
    %59 = vector.extract_strided_slice %16 {offsets = [0, 4], sizes = [4, 1], strides = [1, 1]} : vector<4x36xf32> to vector<4x1xf32>
    %60 = vector.extract_strided_slice %27 {offsets = [0, 0], sizes = [1, 256], strides = [1, 1]} : vector<4x256xf32> to vector<1x256xf32>
    %61 = vector.broadcast %59 : vector<4x1xf32> to vector<4x256xf32>
    %62 = vector.broadcast %60 : vector<1x256xf32> to vector<4x256xf32>
    %63 = arith.mulf %61, %62 : vector<4x256xf32>
    %64 = arith.addf %58, %63 : vector<4x256xf32>
    %65 = vector.extract_strided_slice %16 {offsets = [0, 5], sizes = [4, 1], strides = [1, 1]} : vector<4x36xf32> to vector<4x1xf32>
    %66 = vector.extract_strided_slice %27 {offsets = [1, 0], sizes = [1, 256], strides = [1, 1]} : vector<4x256xf32> to vector<1x256xf32>
    %67 = vector.broadcast %65 : vector<4x1xf32> to vector<4x256xf32>
    %68 = vector.broadcast %66 : vector<1x256xf32> to vector<4x256xf32>
    %69 = arith.mulf %67, %68 : vector<4x256xf32>
    %70 = arith.addf %64, %69 : vector<4x256xf32>
    %71 = vector.extract_strided_slice %16 {offsets = [0, 6], sizes = [4, 1], strides = [1, 1]} : vector<4x36xf32> to vector<4x1xf32>
    %72 = vector.extract_strided_slice %27 {offsets = [2, 0], sizes = [1, 256], strides = [1, 1]} : vector<4x256xf32> to vector<1x256xf32>
    %73 = vector.broadcast %71 : vector<4x1xf32> to vector<4x256xf32>
    %74 = vector.broadcast %72 : vector<1x256xf32> to vector<4x256xf32>
    %75 = arith.mulf %73, %74 : vector<4x256xf32>
    %76 = arith.addf %70, %75 : vector<4x256xf32>
    %77 = vector.extract_strided_slice %16 {offsets = [0, 7], sizes = [4, 1], strides = [1, 1]} : vector<4x36xf32> to vector<4x1xf32>
    %78 = vector.extract_strided_slice %27 {offsets = [3, 0], sizes = [1, 256], strides = [1, 1]} : vector<4x256xf32> to vector<1x256xf32>
    %79 = vector.broadcast %77 : vector<4x1xf32> to vector<4x256xf32>
    %80 = vector.broadcast %78 : vector<1x256xf32> to vector<4x256xf32>
    %81 = arith.mulf %79, %80 : vector<4x256xf32>
    %82 = arith.addf %76, %81 : vector<4x256xf32>
    %83 = vector.extract_strided_slice %27 {offsets = [0, 1], sizes = [4, 255], strides = [1, 1]} : vector<4x256xf32> to vector<4x255xf32>
    %84 = vector.extract_strided_slice %27 {offsets = [0, 0], sizes = [4, 1], strides = [1, 1]} : vector<4x256xf32> to vector<4x1xf32>
    %85 = tpu.concatenate %83, %84 in 1 : vector<4x255xf32>, vector<4x1xf32> -> vector<4x256xf32>
    %86 = vector.extract_strided_slice %27 {offsets = [0, 255], sizes = [4, 1], strides = [1, 1]} : vector<4x256xf32> to vector<4x1xf32>
    %87 = vector.extract_strided_slice %27 {offsets = [0, 0], sizes = [4, 255], strides = [1, 1]} : vector<4x256xf32> to vector<4x255xf32>
    %88 = tpu.concatenate %86, %87 in 1 : vector<4x1xf32>, vector<4x255xf32> -> vector<4x256xf32>
    %89 = arith.select %13, %88, %85 : vector<4x256xi1>, vector<4x256xf32>
    %90 = vector.extract_strided_slice %16 {offsets = [0, 8], sizes = [4, 1], strides = [1, 1]} : vector<4x36xf32> to vector<4x1xf32>
    %91 = vector.extract_strided_slice %89 {offsets = [0, 0], sizes = [1, 256], strides = [1, 1]} : vector<4x256xf32> to vector<1x256xf32>
    %92 = vector.broadcast %90 : vector<4x1xf32> to vector<4x256xf32>
    %93 = vector.broadcast %91 : vector<1x256xf32> to vector<4x256xf32>
    %94 = arith.mulf %92, %93 : vector<4x256xf32>
    %95 = arith.addf %82, %94 : vector<4x256xf32>
    %96 = vector.extract_strided_slice %16 {offsets = [0, 9], sizes = [4, 1], strides = [1, 1]} : vector<4x36xf32> to vector<4x1xf32>
    %97 = vector.extract_strided_slice %89 {offsets = [1, 0], sizes = [1, 256], strides = [1, 1]} : vector<4x256xf32> to vector<1x256xf32>
    %98 = vector.broadcast %96 : vector<4x1xf32> to vector<4x256xf32>
    %99 = vector.broadcast %97 : vector<1x256xf32> to vector<4x256xf32>
    %100 = arith.mulf %98, %99 : vector<4x256xf32>
    %101 = arith.addf %95, %100 : vector<4x256xf32>
    %102 = vector.extract_strided_slice %16 {offsets = [0, 10], sizes = [4, 1], strides = [1, 1]} : vector<4x36xf32> to vector<4x1xf32>
    %103 = vector.extract_strided_slice %89 {offsets = [2, 0], sizes = [1, 256], strides = [1, 1]} : vector<4x256xf32> to vector<1x256xf32>
    %104 = vector.broadcast %102 : vector<4x1xf32> to vector<4x256xf32>
    %105 = vector.broadcast %103 : vector<1x256xf32> to vector<4x256xf32>
    %106 = arith.mulf %104, %105 : vector<4x256xf32>
    %107 = arith.addf %101, %106 : vector<4x256xf32>
    %108 = vector.extract_strided_slice %16 {offsets = [0, 11], sizes = [4, 1], strides = [1, 1]} : vector<4x36xf32> to vector<4x1xf32>
    %109 = vector.extract_strided_slice %89 {offsets = [3, 0], sizes = [1, 256], strides = [1, 1]} : vector<4x256xf32> to vector<1x256xf32>
    %110 = vector.broadcast %108 : vector<4x1xf32> to vector<4x256xf32>
    %111 = vector.broadcast %109 : vector<1x256xf32> to vector<4x256xf32>
    %112 = arith.mulf %110, %111 : vector<4x256xf32>
    %113 = arith.addf %107, %112 : vector<4x256xf32>
    %114 = vector.extract_strided_slice %15 {offsets = [0, 1], sizes = [4, 255], strides = [1, 1]} : vector<4x256xf32> to vector<4x255xf32>
    %115 = vector.extract_strided_slice %15 {offsets = [0, 0], sizes = [4, 1], strides = [1, 1]} : vector<4x256xf32> to vector<4x1xf32>
    %116 = tpu.concatenate %114, %115 in 1 : vector<4x255xf32>, vector<4x1xf32> -> vector<4x256xf32>
    %117 = vector.extract_strided_slice %15 {offsets = [0, 255], sizes = [4, 1], strides = [1, 1]} : vector<4x256xf32> to vector<4x1xf32>
    %118 = vector.extract_strided_slice %15 {offsets = [0, 0], sizes = [4, 255], strides = [1, 1]} : vector<4x256xf32> to vector<4x255xf32>
    %119 = tpu.concatenate %117, %118 in 1 : vector<4x1xf32>, vector<4x255xf32> -> vector<4x256xf32>
    %120 = arith.select %11, %116, %119 : vector<4x256xi1>, vector<4x256xf32>
    %121 = vector.extract_strided_slice %16 {offsets = [0, 12], sizes = [4, 1], strides = [1, 1]} : vector<4x36xf32> to vector<4x1xf32>
    %122 = vector.extract_strided_slice %120 {offsets = [0, 0], sizes = [1, 256], strides = [1, 1]} : vector<4x256xf32> to vector<1x256xf32>
    %123 = vector.broadcast %121 : vector<4x1xf32> to vector<4x256xf32>
    %124 = vector.broadcast %122 : vector<1x256xf32> to vector<4x256xf32>
    %125 = arith.mulf %123, %124 : vector<4x256xf32>
    %126 = arith.addf %113, %125 : vector<4x256xf32>
    %127 = vector.extract_strided_slice %16 {offsets = [0, 13], sizes = [4, 1], strides = [1, 1]} : vector<4x36xf32> to vector<4x1xf32>
    %128 = vector.extract_strided_slice %120 {offsets = [1, 0], sizes = [1, 256], strides = [1, 1]} : vector<4x256xf32> to vector<1x256xf32>
    %129 = vector.broadcast %127 : vector<4x1xf32> to vector<4x256xf32>
    %130 = vector.broadcast %128 : vector<1x256xf32> to vector<4x256xf32>
    %131 = arith.mulf %129, %130 : vector<4x256xf32>
    %132 = arith.addf %126, %131 : vector<4x256xf32>
    %133 = vector.extract_strided_slice %16 {offsets = [0, 14], sizes = [4, 1], strides = [1, 1]} : vector<4x36xf32> to vector<4x1xf32>
    %134 = vector.extract_strided_slice %120 {offsets = [2, 0], sizes = [1, 256], strides = [1, 1]} : vector<4x256xf32> to vector<1x256xf32>
    %135 = vector.broadcast %133 : vector<4x1xf32> to vector<4x256xf32>
    %136 = vector.broadcast %134 : vector<1x256xf32> to vector<4x256xf32>
    %137 = arith.mulf %135, %136 : vector<4x256xf32>
    %138 = arith.addf %132, %137 : vector<4x256xf32>
    %139 = vector.extract_strided_slice %16 {offsets = [0, 15], sizes = [4, 1], strides = [1, 1]} : vector<4x36xf32> to vector<4x1xf32>
    %140 = vector.extract_strided_slice %120 {offsets = [3, 0], sizes = [1, 256], strides = [1, 1]} : vector<4x256xf32> to vector<1x256xf32>
    %141 = vector.broadcast %139 : vector<4x1xf32> to vector<4x256xf32>
    %142 = vector.broadcast %140 : vector<1x256xf32> to vector<4x256xf32>
    %143 = arith.mulf %141, %142 : vector<4x256xf32>
    %144 = arith.addf %138, %143 : vector<4x256xf32>
    %145 = vector.extract_strided_slice %16 {offsets = [0, 16], sizes = [4, 1], strides = [1, 1]} : vector<4x36xf32> to vector<4x1xf32>
    %146 = vector.extract_strided_slice %15 {offsets = [0, 0], sizes = [1, 256], strides = [1, 1]} : vector<4x256xf32> to vector<1x256xf32>
    %147 = vector.broadcast %145 : vector<4x1xf32> to vector<4x256xf32>
    %148 = vector.broadcast %146 : vector<1x256xf32> to vector<4x256xf32>
    %149 = arith.mulf %147, %148 : vector<4x256xf32>
    %150 = arith.addf %144, %149 : vector<4x256xf32>
    %151 = vector.extract_strided_slice %16 {offsets = [0, 17], sizes = [4, 1], strides = [1, 1]} : vector<4x36xf32> to vector<4x1xf32>
    %152 = vector.extract_strided_slice %15 {offsets = [1, 0], sizes = [1, 256], strides = [1, 1]} : vector<4x256xf32> to vector<1x256xf32>
    %153 = vector.broadcast %151 : vector<4x1xf32> to vector<4x256xf32>
    %154 = vector.broadcast %152 : vector<1x256xf32> to vector<4x256xf32>
    %155 = arith.mulf %153, %154 : vector<4x256xf32>
    %156 = arith.addf %150, %155 : vector<4x256xf32>
    %157 = vector.extract_strided_slice %16 {offsets = [0, 18], sizes = [4, 1], strides = [1, 1]} : vector<4x36xf32> to vector<4x1xf32>
    %158 = vector.extract_strided_slice %15 {offsets = [2, 0], sizes = [1, 256], strides = [1, 1]} : vector<4x256xf32> to vector<1x256xf32>
    %159 = vector.broadcast %157 : vector<4x1xf32> to vector<4x256xf32>
    %160 = vector.broadcast %158 : vector<1x256xf32> to vector<4x256xf32>
    %161 = arith.mulf %159, %160 : vector<4x256xf32>
    %162 = arith.addf %156, %161 : vector<4x256xf32>
    %163 = vector.extract_strided_slice %16 {offsets = [0, 19], sizes = [4, 1], strides = [1, 1]} : vector<4x36xf32> to vector<4x1xf32>
    %164 = vector.extract_strided_slice %15 {offsets = [3, 0], sizes = [1, 256], strides = [1, 1]} : vector<4x256xf32> to vector<1x256xf32>
    %165 = vector.broadcast %163 : vector<4x1xf32> to vector<4x256xf32>
    %166 = vector.broadcast %164 : vector<1x256xf32> to vector<4x256xf32>
    %167 = arith.mulf %165, %166 : vector<4x256xf32>
    %168 = arith.addf %162, %167 : vector<4x256xf32>
    %169 = vector.extract_strided_slice %15 {offsets = [0, 1], sizes = [4, 255], strides = [1, 1]} : vector<4x256xf32> to vector<4x255xf32>
    %170 = vector.extract_strided_slice %15 {offsets = [0, 0], sizes = [4, 1], strides = [1, 1]} : vector<4x256xf32> to vector<4x1xf32>
    %171 = tpu.concatenate %169, %170 in 1 : vector<4x255xf32>, vector<4x1xf32> -> vector<4x256xf32>
    %172 = vector.extract_strided_slice %15 {offsets = [0, 255], sizes = [4, 1], strides = [1, 1]} : vector<4x256xf32> to vector<4x1xf32>
    %173 = vector.extract_strided_slice %15 {offsets = [0, 0], sizes = [4, 255], strides = [1, 1]} : vector<4x256xf32> to vector<4x255xf32>
    %174 = tpu.concatenate %172, %173 in 1 : vector<4x1xf32>, vector<4x255xf32> -> vector<4x256xf32>
    %175 = arith.select %13, %174, %171 : vector<4x256xi1>, vector<4x256xf32>
    %176 = vector.extract_strided_slice %16 {offsets = [0, 20], sizes = [4, 1], strides = [1, 1]} : vector<4x36xf32> to vector<4x1xf32>
    %177 = vector.extract_strided_slice %175 {offsets = [0, 0], sizes = [1, 256], strides = [1, 1]} : vector<4x256xf32> to vector<1x256xf32>
    %178 = vector.broadcast %176 : vector<4x1xf32> to vector<4x256xf32>
    %179 = vector.broadcast %177 : vector<1x256xf32> to vector<4x256xf32>
    %180 = arith.mulf %178, %179 : vector<4x256xf32>
    %181 = arith.addf %168, %180 : vector<4x256xf32>
    %182 = vector.extract_strided_slice %16 {offsets = [0, 21], sizes = [4, 1], strides = [1, 1]} : vector<4x36xf32> to vector<4x1xf32>
    %183 = vector.extract_strided_slice %175 {offsets = [1, 0], sizes = [1, 256], strides = [1, 1]} : vector<4x256xf32> to vector<1x256xf32>
    %184 = vector.broadcast %182 : vector<4x1xf32> to vector<4x256xf32>
    %185 = vector.broadcast %183 : vector<1x256xf32> to vector<4x256xf32>
    %186 = arith.mulf %184, %185 : vector<4x256xf32>
    %187 = arith.addf %181, %186 : vector<4x256xf32>
    %188 = vector.extract_strided_slice %16 {offsets = [0, 22], sizes = [4, 1], strides = [1, 1]} : vector<4x36xf32> to vector<4x1xf32>
    %189 = vector.extract_strided_slice %175 {offsets = [2, 0], sizes = [1, 256], strides = [1, 1]} : vector<4x256xf32> to vector<1x256xf32>
    %190 = vector.broadcast %188 : vector<4x1xf32> to vector<4x256xf32>
    %191 = vector.broadcast %189 : vector<1x256xf32> to vector<4x256xf32>
    %192 = arith.mulf %190, %191 : vector<4x256xf32>
    %193 = arith.addf %187, %192 : vector<4x256xf32>
    %194 = vector.extract_strided_slice %16 {offsets = [0, 23], sizes = [4, 1], strides = [1, 1]} : vector<4x36xf32> to vector<4x1xf32>
    %195 = vector.extract_strided_slice %175 {offsets = [3, 0], sizes = [1, 256], strides = [1, 1]} : vector<4x256xf32> to vector<1x256xf32>
    %196 = vector.broadcast %194 : vector<4x1xf32> to vector<4x256xf32>
    %197 = vector.broadcast %195 : vector<1x256xf32> to vector<4x256xf32>
    %198 = arith.mulf %196, %197 : vector<4x256xf32>
    %199 = arith.addf %193, %198 : vector<4x256xf32>
    %200 = vector.extract_strided_slice %15 {offsets = [0, 16], sizes = [4, 240], strides = [1, 1]} : vector<4x256xf32> to vector<4x240xf32>
    %201 = vector.extract_strided_slice %15 {offsets = [0, 0], sizes = [4, 16], strides = [1, 1]} : vector<4x256xf32> to vector<4x16xf32>
    %202 = tpu.concatenate %200, %201 in 1 : vector<4x240xf32>, vector<4x16xf32> -> vector<4x256xf32>
    %203 = vector.extract_strided_slice %15 {offsets = [0, 240], sizes = [4, 16], strides = [1, 1]} : vector<4x256xf32> to vector<4x16xf32>
    %204 = vector.extract_strided_slice %15 {offsets = [0, 0], sizes = [4, 240], strides = [1, 1]} : vector<4x256xf32> to vector<4x240xf32>
    %205 = tpu.concatenate %203, %204 in 1 : vector<4x16xf32>, vector<4x240xf32> -> vector<4x256xf32>
    %206 = arith.select %9, %205, %202 : vector<4x256xi1>, vector<4x256xf32>
    %207 = vector.extract_strided_slice %206 {offsets = [0, 1], sizes = [4, 255], strides = [1, 1]} : vector<4x256xf32> to vector<4x255xf32>
    %208 = vector.extract_strided_slice %206 {offsets = [0, 0], sizes = [4, 1], strides = [1, 1]} : vector<4x256xf32> to vector<4x1xf32>
    %209 = tpu.concatenate %207, %208 in 1 : vector<4x255xf32>, vector<4x1xf32> -> vector<4x256xf32>
    %210 = vector.extract_strided_slice %206 {offsets = [0, 255], sizes = [4, 1], strides = [1, 1]} : vector<4x256xf32> to vector<4x1xf32>
    %211 = vector.extract_strided_slice %206 {offsets = [0, 0], sizes = [4, 255], strides = [1, 1]} : vector<4x256xf32> to vector<4x255xf32>
    %212 = tpu.concatenate %210, %211 in 1 : vector<4x1xf32>, vector<4x255xf32> -> vector<4x256xf32>
    %213 = arith.select %11, %209, %212 : vector<4x256xi1>, vector<4x256xf32>
    %214 = vector.extract_strided_slice %16 {offsets = [0, 24], sizes = [4, 1], strides = [1, 1]} : vector<4x36xf32> to vector<4x1xf32>
    %215 = vector.extract_strided_slice %213 {offsets = [0, 0], sizes = [1, 256], strides = [1, 1]} : vector<4x256xf32> to vector<1x256xf32>
    %216 = vector.broadcast %214 : vector<4x1xf32> to vector<4x256xf32>
    %217 = vector.broadcast %215 : vector<1x256xf32> to vector<4x256xf32>
    %218 = arith.mulf %216, %217 : vector<4x256xf32>
    %219 = arith.addf %199, %218 : vector<4x256xf32>
    %220 = vector.extract_strided_slice %16 {offsets = [0, 25], sizes = [4, 1], strides = [1, 1]} : vector<4x36xf32> to vector<4x1xf32>
    %221 = vector.extract_strided_slice %213 {offsets = [1, 0], sizes = [1, 256], strides = [1, 1]} : vector<4x256xf32> to vector<1x256xf32>
    %222 = vector.broadcast %220 : vector<4x1xf32> to vector<4x256xf32>
    %223 = vector.broadcast %221 : vector<1x256xf32> to vector<4x256xf32>
    %224 = arith.mulf %222, %223 : vector<4x256xf32>
    %225 = arith.addf %219, %224 : vector<4x256xf32>
    %226 = vector.extract_strided_slice %16 {offsets = [0, 26], sizes = [4, 1], strides = [1, 1]} : vector<4x36xf32> to vector<4x1xf32>
    %227 = vector.extract_strided_slice %213 {offsets = [2, 0], sizes = [1, 256], strides = [1, 1]} : vector<4x256xf32> to vector<1x256xf32>
    %228 = vector.broadcast %226 : vector<4x1xf32> to vector<4x256xf32>
    %229 = vector.broadcast %227 : vector<1x256xf32> to vector<4x256xf32>
    %230 = arith.mulf %228, %229 : vector<4x256xf32>
    %231 = arith.addf %225, %230 : vector<4x256xf32>
    %232 = vector.extract_strided_slice %16 {offsets = [0, 27], sizes = [4, 1], strides = [1, 1]} : vector<4x36xf32> to vector<4x1xf32>
    %233 = vector.extract_strided_slice %213 {offsets = [3, 0], sizes = [1, 256], strides = [1, 1]} : vector<4x256xf32> to vector<1x256xf32>
    %234 = vector.broadcast %232 : vector<4x1xf32> to vector<4x256xf32>
    %235 = vector.broadcast %233 : vector<1x256xf32> to vector<4x256xf32>
    %236 = arith.mulf %234, %235 : vector<4x256xf32>
    %237 = arith.addf %231, %236 : vector<4x256xf32>
    %238 = vector.extract_strided_slice %16 {offsets = [0, 28], sizes = [4, 1], strides = [1, 1]} : vector<4x36xf32> to vector<4x1xf32>
    %239 = vector.extract_strided_slice %206 {offsets = [0, 0], sizes = [1, 256], strides = [1, 1]} : vector<4x256xf32> to vector<1x256xf32>
    %240 = vector.broadcast %238 : vector<4x1xf32> to vector<4x256xf32>
    %241 = vector.broadcast %239 : vector<1x256xf32> to vector<4x256xf32>
    %242 = arith.mulf %240, %241 : vector<4x256xf32>
    %243 = arith.addf %237, %242 : vector<4x256xf32>
    %244 = vector.extract_strided_slice %16 {offsets = [0, 29], sizes = [4, 1], strides = [1, 1]} : vector<4x36xf32> to vector<4x1xf32>
    %245 = vector.extract_strided_slice %206 {offsets = [1, 0], sizes = [1, 256], strides = [1, 1]} : vector<4x256xf32> to vector<1x256xf32>
    %246 = vector.broadcast %244 : vector<4x1xf32> to vector<4x256xf32>
    %247 = vector.broadcast %245 : vector<1x256xf32> to vector<4x256xf32>
    %248 = arith.mulf %246, %247 : vector<4x256xf32>
    %249 = arith.addf %243, %248 : vector<4x256xf32>
    %250 = vector.extract_strided_slice %16 {offsets = [0, 30], sizes = [4, 1], strides = [1, 1]} : vector<4x36xf32> to vector<4x1xf32>
    %251 = vector.extract_strided_slice %206 {offsets = [2, 0], sizes = [1, 256], strides = [1, 1]} : vector<4x256xf32> to vector<1x256xf32>
    %252 = vector.broadcast %250 : vector<4x1xf32> to vector<4x256xf32>
    %253 = vector.broadcast %251 : vector<1x256xf32> to vector<4x256xf32>
    %254 = arith.mulf %252, %253 : vector<4x256xf32>
    %255 = arith.addf %249, %254 : vector<4x256xf32>
    %256 = vector.extract_strided_slice %16 {offsets = [0, 31], sizes = [4, 1], strides = [1, 1]} : vector<4x36xf32> to vector<4x1xf32>
    %257 = vector.extract_strided_slice %206 {offsets = [3, 0], sizes = [1, 256], strides = [1, 1]} : vector<4x256xf32> to vector<1x256xf32>
    %258 = vector.broadcast %256 : vector<4x1xf32> to vector<4x256xf32>
    %259 = vector.broadcast %257 : vector<1x256xf32> to vector<4x256xf32>
    %260 = arith.mulf %258, %259 : vector<4x256xf32>
    %261 = arith.addf %255, %260 : vector<4x256xf32>
    %262 = vector.extract_strided_slice %206 {offsets = [0, 1], sizes = [4, 255], strides = [1, 1]} : vector<4x256xf32> to vector<4x255xf32>
    %263 = vector.extract_strided_slice %206 {offsets = [0, 0], sizes = [4, 1], strides = [1, 1]} : vector<4x256xf32> to vector<4x1xf32>
    %264 = tpu.concatenate %262, %263 in 1 : vector<4x255xf32>, vector<4x1xf32> -> vector<4x256xf32>
    %265 = vector.extract_strided_slice %206 {offsets = [0, 255], sizes = [4, 1], strides = [1, 1]} : vector<4x256xf32> to vector<4x1xf32>
    %266 = vector.extract_strided_slice %206 {offsets = [0, 0], sizes = [4, 255], strides = [1, 1]} : vector<4x256xf32> to vector<4x255xf32>
    %267 = tpu.concatenate %265, %266 in 1 : vector<4x1xf32>, vector<4x255xf32> -> vector<4x256xf32>
    %268 = arith.select %13, %267, %264 : vector<4x256xi1>, vector<4x256xf32>
    %269 = vector.extract_strided_slice %16 {offsets = [0, 32], sizes = [4, 1], strides = [1, 1]} : vector<4x36xf32> to vector<4x1xf32>
    %270 = vector.extract_strided_slice %268 {offsets = [0, 0], sizes = [1, 256], strides = [1, 1]} : vector<4x256xf32> to vector<1x256xf32>
    %271 = vector.broadcast %269 : vector<4x1xf32> to vector<4x256xf32>
    %272 = vector.broadcast %270 : vector<1x256xf32> to vector<4x256xf32>
    %273 = arith.mulf %271, %272 : vector<4x256xf32>
    %274 = arith.addf %261, %273 : vector<4x256xf32>
    %275 = vector.extract_strided_slice %16 {offsets = [0, 33], sizes = [4, 1], strides = [1, 1]} : vector<4x36xf32> to vector<4x1xf32>
    %276 = vector.extract_strided_slice %268 {offsets = [1, 0], sizes = [1, 256], strides = [1, 1]} : vector<4x256xf32> to vector<1x256xf32>
    %277 = vector.broadcast %275 : vector<4x1xf32> to vector<4x256xf32>
    %278 = vector.broadcast %276 : vector<1x256xf32> to vector<4x256xf32>
    %279 = arith.mulf %277, %278 : vector<4x256xf32>
    %280 = arith.addf %274, %279 : vector<4x256xf32>
    %281 = vector.extract_strided_slice %16 {offsets = [0, 34], sizes = [4, 1], strides = [1, 1]} : vector<4x36xf32> to vector<4x1xf32>
    %282 = vector.extract_strided_slice %268 {offsets = [2, 0], sizes = [1, 256], strides = [1, 1]} : vector<4x256xf32> to vector<1x256xf32>
    %283 = vector.broadcast %281 : vector<4x1xf32> to vector<4x256xf32>
    %284 = vector.broadcast %282 : vector<1x256xf32> to vector<4x256xf32>
    %285 = arith.mulf %283, %284 : vector<4x256xf32>
    %286 = arith.addf %280, %285 : vector<4x256xf32>
    %287 = vector.extract_strided_slice %16 {offsets = [0, 35], sizes = [4, 1], strides = [1, 1]} : vector<4x36xf32> to vector<4x1xf32>
    %288 = vector.extract_strided_slice %268 {offsets = [3, 0], sizes = [1, 256], strides = [1, 1]} : vector<4x256xf32> to vector<1x256xf32>
    %289 = vector.broadcast %287 : vector<4x1xf32> to vector<4x256xf32>
    %290 = vector.broadcast %288 : vector<1x256xf32> to vector<4x256xf32>
    %291 = arith.mulf %289, %290 : vector<4x256xf32>
    %292 = arith.addf %286, %291 : vector<4x256xf32>
    %cst = arith.constant 0.000000e+00 : f32
    %293 = vector.broadcast %cst : f32 to vector<4x256xf32>
    %294 = arith.maximumf %292, %293 : vector<4x256xf32>
    %c0_13 = arith.constant 0 : index
    %c0_14 = arith.constant 0 : index
    %295 = vector.load %arg6[%c0_13, %c0_14] : memref<4x1xf32, #tpu.memory_space<vmem>>, vector<4x1xf32>
    %296 = vector.shape_cast %295 : vector<4x1xf32> to vector<4x1xf32>
    %297 = vector.broadcast %296 : vector<4x1xf32> to vector<4x256xf32>
    %298 = vector.extract_strided_slice %294 {offsets = [0, 16], sizes = [4, 240], strides = [1, 1]} : vector<4x256xf32> to vector<4x240xf32>
    %299 = vector.extract_strided_slice %294 {offsets = [0, 0], sizes = [4, 16], strides = [1, 1]} : vector<4x256xf32> to vector<4x16xf32>
    %300 = tpu.concatenate %298, %299 in 1 : vector<4x240xf32>, vector<4x16xf32> -> vector<4x256xf32>
    %301 = vector.extract_strided_slice %294 {offsets = [0, 240], sizes = [4, 16], strides = [1, 1]} : vector<4x256xf32> to vector<4x16xf32>
    %302 = vector.extract_strided_slice %294 {offsets = [0, 0], sizes = [4, 240], strides = [1, 1]} : vector<4x256xf32> to vector<4x240xf32>
    %303 = tpu.concatenate %301, %302 in 1 : vector<4x16xf32>, vector<4x240xf32> -> vector<4x256xf32>
    %304 = arith.select %7, %300, %303 : vector<4x256xi1>, vector<4x256xf32>
    %305 = vector.extract_strided_slice %304 {offsets = [0, 1], sizes = [4, 255], strides = [1, 1]} : vector<4x256xf32> to vector<4x255xf32>
    %306 = vector.extract_strided_slice %304 {offsets = [0, 0], sizes = [4, 1], strides = [1, 1]} : vector<4x256xf32> to vector<4x1xf32>
    %307 = tpu.concatenate %305, %306 in 1 : vector<4x255xf32>, vector<4x1xf32> -> vector<4x256xf32>
    %308 = vector.extract_strided_slice %304 {offsets = [0, 255], sizes = [4, 1], strides = [1, 1]} : vector<4x256xf32> to vector<4x1xf32>
    %309 = vector.extract_strided_slice %304 {offsets = [0, 0], sizes = [4, 255], strides = [1, 1]} : vector<4x256xf32> to vector<4x255xf32>
    %310 = tpu.concatenate %308, %309 in 1 : vector<4x1xf32>, vector<4x255xf32> -> vector<4x256xf32>
    %311 = arith.select %11, %307, %310 : vector<4x256xi1>, vector<4x256xf32>
    %312 = vector.extract_strided_slice %17 {offsets = [0, 0], sizes = [4, 1], strides = [1, 1]} : vector<4x36xf32> to vector<4x1xf32>
    %313 = vector.extract_strided_slice %311 {offsets = [0, 0], sizes = [1, 256], strides = [1, 1]} : vector<4x256xf32> to vector<1x256xf32>
    %314 = vector.broadcast %312 : vector<4x1xf32> to vector<4x256xf32>
    %315 = vector.broadcast %313 : vector<1x256xf32> to vector<4x256xf32>
    %316 = arith.mulf %314, %315 : vector<4x256xf32>
    %317 = arith.addf %297, %316 : vector<4x256xf32>
    %318 = vector.extract_strided_slice %17 {offsets = [0, 1], sizes = [4, 1], strides = [1, 1]} : vector<4x36xf32> to vector<4x1xf32>
    %319 = vector.extract_strided_slice %311 {offsets = [1, 0], sizes = [1, 256], strides = [1, 1]} : vector<4x256xf32> to vector<1x256xf32>
    %320 = vector.broadcast %318 : vector<4x1xf32> to vector<4x256xf32>
    %321 = vector.broadcast %319 : vector<1x256xf32> to vector<4x256xf32>
    %322 = arith.mulf %320, %321 : vector<4x256xf32>
    %323 = arith.addf %317, %322 : vector<4x256xf32>
    %324 = vector.extract_strided_slice %17 {offsets = [0, 2], sizes = [4, 1], strides = [1, 1]} : vector<4x36xf32> to vector<4x1xf32>
    %325 = vector.extract_strided_slice %311 {offsets = [2, 0], sizes = [1, 256], strides = [1, 1]} : vector<4x256xf32> to vector<1x256xf32>
    %326 = vector.broadcast %324 : vector<4x1xf32> to vector<4x256xf32>
    %327 = vector.broadcast %325 : vector<1x256xf32> to vector<4x256xf32>
    %328 = arith.mulf %326, %327 : vector<4x256xf32>
    %329 = arith.addf %323, %328 : vector<4x256xf32>
    %330 = vector.extract_strided_slice %17 {offsets = [0, 3], sizes = [4, 1], strides = [1, 1]} : vector<4x36xf32> to vector<4x1xf32>
    %331 = vector.extract_strided_slice %311 {offsets = [3, 0], sizes = [1, 256], strides = [1, 1]} : vector<4x256xf32> to vector<1x256xf32>
    %332 = vector.broadcast %330 : vector<4x1xf32> to vector<4x256xf32>
    %333 = vector.broadcast %331 : vector<1x256xf32> to vector<4x256xf32>
    %334 = arith.mulf %332, %333 : vector<4x256xf32>
    %335 = arith.addf %329, %334 : vector<4x256xf32>
    %336 = vector.extract_strided_slice %17 {offsets = [0, 4], sizes = [4, 1], strides = [1, 1]} : vector<4x36xf32> to vector<4x1xf32>
    %337 = vector.extract_strided_slice %304 {offsets = [0, 0], sizes = [1, 256], strides = [1, 1]} : vector<4x256xf32> to vector<1x256xf32>
    %338 = vector.broadcast %336 : vector<4x1xf32> to vector<4x256xf32>
    %339 = vector.broadcast %337 : vector<1x256xf32> to vector<4x256xf32>
    %340 = arith.mulf %338, %339 : vector<4x256xf32>
    %341 = arith.addf %335, %340 : vector<4x256xf32>
    %342 = vector.extract_strided_slice %17 {offsets = [0, 5], sizes = [4, 1], strides = [1, 1]} : vector<4x36xf32> to vector<4x1xf32>
    %343 = vector.extract_strided_slice %304 {offsets = [1, 0], sizes = [1, 256], strides = [1, 1]} : vector<4x256xf32> to vector<1x256xf32>
    %344 = vector.broadcast %342 : vector<4x1xf32> to vector<4x256xf32>
    %345 = vector.broadcast %343 : vector<1x256xf32> to vector<4x256xf32>
    %346 = arith.mulf %344, %345 : vector<4x256xf32>
    %347 = arith.addf %341, %346 : vector<4x256xf32>
    %348 = vector.extract_strided_slice %17 {offsets = [0, 6], sizes = [4, 1], strides = [1, 1]} : vector<4x36xf32> to vector<4x1xf32>
    %349 = vector.extract_strided_slice %304 {offsets = [2, 0], sizes = [1, 256], strides = [1, 1]} : vector<4x256xf32> to vector<1x256xf32>
    %350 = vector.broadcast %348 : vector<4x1xf32> to vector<4x256xf32>
    %351 = vector.broadcast %349 : vector<1x256xf32> to vector<4x256xf32>
    %352 = arith.mulf %350, %351 : vector<4x256xf32>
    %353 = arith.addf %347, %352 : vector<4x256xf32>
    %354 = vector.extract_strided_slice %17 {offsets = [0, 7], sizes = [4, 1], strides = [1, 1]} : vector<4x36xf32> to vector<4x1xf32>
    %355 = vector.extract_strided_slice %304 {offsets = [3, 0], sizes = [1, 256], strides = [1, 1]} : vector<4x256xf32> to vector<1x256xf32>
    %356 = vector.broadcast %354 : vector<4x1xf32> to vector<4x256xf32>
    %357 = vector.broadcast %355 : vector<1x256xf32> to vector<4x256xf32>
    %358 = arith.mulf %356, %357 : vector<4x256xf32>
    %359 = arith.addf %353, %358 : vector<4x256xf32>
    %360 = vector.extract_strided_slice %304 {offsets = [0, 1], sizes = [4, 255], strides = [1, 1]} : vector<4x256xf32> to vector<4x255xf32>
    %361 = vector.extract_strided_slice %304 {offsets = [0, 0], sizes = [4, 1], strides = [1, 1]} : vector<4x256xf32> to vector<4x1xf32>
    %362 = tpu.concatenate %360, %361 in 1 : vector<4x255xf32>, vector<4x1xf32> -> vector<4x256xf32>
    %363 = vector.extract_strided_slice %304 {offsets = [0, 255], sizes = [4, 1], strides = [1, 1]} : vector<4x256xf32> to vector<4x1xf32>
    %364 = vector.extract_strided_slice %304 {offsets = [0, 0], sizes = [4, 255], strides = [1, 1]} : vector<4x256xf32> to vector<4x255xf32>
    %365 = tpu.concatenate %363, %364 in 1 : vector<4x1xf32>, vector<4x255xf32> -> vector<4x256xf32>
    %366 = arith.select %13, %365, %362 : vector<4x256xi1>, vector<4x256xf32>
    %367 = vector.extract_strided_slice %17 {offsets = [0, 8], sizes = [4, 1], strides = [1, 1]} : vector<4x36xf32> to vector<4x1xf32>
    %368 = vector.extract_strided_slice %366 {offsets = [0, 0], sizes = [1, 256], strides = [1, 1]} : vector<4x256xf32> to vector<1x256xf32>
    %369 = vector.broadcast %367 : vector<4x1xf32> to vector<4x256xf32>
    %370 = vector.broadcast %368 : vector<1x256xf32> to vector<4x256xf32>
    %371 = arith.mulf %369, %370 : vector<4x256xf32>
    %372 = arith.addf %359, %371 : vector<4x256xf32>
    %373 = vector.extract_strided_slice %17 {offsets = [0, 9], sizes = [4, 1], strides = [1, 1]} : vector<4x36xf32> to vector<4x1xf32>
    %374 = vector.extract_strided_slice %366 {offsets = [1, 0], sizes = [1, 256], strides = [1, 1]} : vector<4x256xf32> to vector<1x256xf32>
    %375 = vector.broadcast %373 : vector<4x1xf32> to vector<4x256xf32>
    %376 = vector.broadcast %374 : vector<1x256xf32> to vector<4x256xf32>
    %377 = arith.mulf %375, %376 : vector<4x256xf32>
    %378 = arith.addf %372, %377 : vector<4x256xf32>
    %379 = vector.extract_strided_slice %17 {offsets = [0, 10], sizes = [4, 1], strides = [1, 1]} : vector<4x36xf32> to vector<4x1xf32>
    %380 = vector.extract_strided_slice %366 {offsets = [2, 0], sizes = [1, 256], strides = [1, 1]} : vector<4x256xf32> to vector<1x256xf32>
    %381 = vector.broadcast %379 : vector<4x1xf32> to vector<4x256xf32>
    %382 = vector.broadcast %380 : vector<1x256xf32> to vector<4x256xf32>
    %383 = arith.mulf %381, %382 : vector<4x256xf32>
    %384 = arith.addf %378, %383 : vector<4x256xf32>
    %385 = vector.extract_strided_slice %17 {offsets = [0, 11], sizes = [4, 1], strides = [1, 1]} : vector<4x36xf32> to vector<4x1xf32>
    %386 = vector.extract_strided_slice %366 {offsets = [3, 0], sizes = [1, 256], strides = [1, 1]} : vector<4x256xf32> to vector<1x256xf32>
    %387 = vector.broadcast %385 : vector<4x1xf32> to vector<4x256xf32>
    %388 = vector.broadcast %386 : vector<1x256xf32> to vector<4x256xf32>
    %389 = arith.mulf %387, %388 : vector<4x256xf32>
    %390 = arith.addf %384, %389 : vector<4x256xf32>
    %391 = vector.extract_strided_slice %294 {offsets = [0, 1], sizes = [4, 255], strides = [1, 1]} : vector<4x256xf32> to vector<4x255xf32>
    %392 = vector.extract_strided_slice %294 {offsets = [0, 0], sizes = [4, 1], strides = [1, 1]} : vector<4x256xf32> to vector<4x1xf32>
    %393 = tpu.concatenate %391, %392 in 1 : vector<4x255xf32>, vector<4x1xf32> -> vector<4x256xf32>
    %394 = vector.extract_strided_slice %294 {offsets = [0, 255], sizes = [4, 1], strides = [1, 1]} : vector<4x256xf32> to vector<4x1xf32>
    %395 = vector.extract_strided_slice %294 {offsets = [0, 0], sizes = [4, 255], strides = [1, 1]} : vector<4x256xf32> to vector<4x255xf32>
    %396 = tpu.concatenate %394, %395 in 1 : vector<4x1xf32>, vector<4x255xf32> -> vector<4x256xf32>
    %397 = arith.select %11, %393, %396 : vector<4x256xi1>, vector<4x256xf32>
    %398 = vector.extract_strided_slice %17 {offsets = [0, 12], sizes = [4, 1], strides = [1, 1]} : vector<4x36xf32> to vector<4x1xf32>
    %399 = vector.extract_strided_slice %397 {offsets = [0, 0], sizes = [1, 256], strides = [1, 1]} : vector<4x256xf32> to vector<1x256xf32>
    %400 = vector.broadcast %398 : vector<4x1xf32> to vector<4x256xf32>
    %401 = vector.broadcast %399 : vector<1x256xf32> to vector<4x256xf32>
    %402 = arith.mulf %400, %401 : vector<4x256xf32>
    %403 = arith.addf %390, %402 : vector<4x256xf32>
    %404 = vector.extract_strided_slice %17 {offsets = [0, 13], sizes = [4, 1], strides = [1, 1]} : vector<4x36xf32> to vector<4x1xf32>
    %405 = vector.extract_strided_slice %397 {offsets = [1, 0], sizes = [1, 256], strides = [1, 1]} : vector<4x256xf32> to vector<1x256xf32>
    %406 = vector.broadcast %404 : vector<4x1xf32> to vector<4x256xf32>
    %407 = vector.broadcast %405 : vector<1x256xf32> to vector<4x256xf32>
    %408 = arith.mulf %406, %407 : vector<4x256xf32>
    %409 = arith.addf %403, %408 : vector<4x256xf32>
    %410 = vector.extract_strided_slice %17 {offsets = [0, 14], sizes = [4, 1], strides = [1, 1]} : vector<4x36xf32> to vector<4x1xf32>
    %411 = vector.extract_strided_slice %397 {offsets = [2, 0], sizes = [1, 256], strides = [1, 1]} : vector<4x256xf32> to vector<1x256xf32>
    %412 = vector.broadcast %410 : vector<4x1xf32> to vector<4x256xf32>
    %413 = vector.broadcast %411 : vector<1x256xf32> to vector<4x256xf32>
    %414 = arith.mulf %412, %413 : vector<4x256xf32>
    %415 = arith.addf %409, %414 : vector<4x256xf32>
    %416 = vector.extract_strided_slice %17 {offsets = [0, 15], sizes = [4, 1], strides = [1, 1]} : vector<4x36xf32> to vector<4x1xf32>
    %417 = vector.extract_strided_slice %397 {offsets = [3, 0], sizes = [1, 256], strides = [1, 1]} : vector<4x256xf32> to vector<1x256xf32>
    %418 = vector.broadcast %416 : vector<4x1xf32> to vector<4x256xf32>
    %419 = vector.broadcast %417 : vector<1x256xf32> to vector<4x256xf32>
    %420 = arith.mulf %418, %419 : vector<4x256xf32>
    %421 = arith.addf %415, %420 : vector<4x256xf32>
    %422 = vector.extract_strided_slice %17 {offsets = [0, 16], sizes = [4, 1], strides = [1, 1]} : vector<4x36xf32> to vector<4x1xf32>
    %423 = vector.extract_strided_slice %294 {offsets = [0, 0], sizes = [1, 256], strides = [1, 1]} : vector<4x256xf32> to vector<1x256xf32>
    %424 = vector.broadcast %422 : vector<4x1xf32> to vector<4x256xf32>
    %425 = vector.broadcast %423 : vector<1x256xf32> to vector<4x256xf32>
    %426 = arith.mulf %424, %425 : vector<4x256xf32>
    %427 = arith.addf %421, %426 : vector<4x256xf32>
    %428 = vector.extract_strided_slice %17 {offsets = [0, 17], sizes = [4, 1], strides = [1, 1]} : vector<4x36xf32> to vector<4x1xf32>
    %429 = vector.extract_strided_slice %294 {offsets = [1, 0], sizes = [1, 256], strides = [1, 1]} : vector<4x256xf32> to vector<1x256xf32>
    %430 = vector.broadcast %428 : vector<4x1xf32> to vector<4x256xf32>
    %431 = vector.broadcast %429 : vector<1x256xf32> to vector<4x256xf32>
    %432 = arith.mulf %430, %431 : vector<4x256xf32>
    %433 = arith.addf %427, %432 : vector<4x256xf32>
    %434 = vector.extract_strided_slice %17 {offsets = [0, 18], sizes = [4, 1], strides = [1, 1]} : vector<4x36xf32> to vector<4x1xf32>
    %435 = vector.extract_strided_slice %294 {offsets = [2, 0], sizes = [1, 256], strides = [1, 1]} : vector<4x256xf32> to vector<1x256xf32>
    %436 = vector.broadcast %434 : vector<4x1xf32> to vector<4x256xf32>
    %437 = vector.broadcast %435 : vector<1x256xf32> to vector<4x256xf32>
    %438 = arith.mulf %436, %437 : vector<4x256xf32>
    %439 = arith.addf %433, %438 : vector<4x256xf32>
    %440 = vector.extract_strided_slice %17 {offsets = [0, 19], sizes = [4, 1], strides = [1, 1]} : vector<4x36xf32> to vector<4x1xf32>
    %441 = vector.extract_strided_slice %294 {offsets = [3, 0], sizes = [1, 256], strides = [1, 1]} : vector<4x256xf32> to vector<1x256xf32>
    %442 = vector.broadcast %440 : vector<4x1xf32> to vector<4x256xf32>
    %443 = vector.broadcast %441 : vector<1x256xf32> to vector<4x256xf32>
    %444 = arith.mulf %442, %443 : vector<4x256xf32>
    %445 = arith.addf %439, %444 : vector<4x256xf32>
    %446 = vector.extract_strided_slice %294 {offsets = [0, 1], sizes = [4, 255], strides = [1, 1]} : vector<4x256xf32> to vector<4x255xf32>
    %447 = vector.extract_strided_slice %294 {offsets = [0, 0], sizes = [4, 1], strides = [1, 1]} : vector<4x256xf32> to vector<4x1xf32>
    %448 = tpu.concatenate %446, %447 in 1 : vector<4x255xf32>, vector<4x1xf32> -> vector<4x256xf32>
    %449 = vector.extract_strided_slice %294 {offsets = [0, 255], sizes = [4, 1], strides = [1, 1]} : vector<4x256xf32> to vector<4x1xf32>
    %450 = vector.extract_strided_slice %294 {offsets = [0, 0], sizes = [4, 255], strides = [1, 1]} : vector<4x256xf32> to vector<4x255xf32>
    %451 = tpu.concatenate %449, %450 in 1 : vector<4x1xf32>, vector<4x255xf32> -> vector<4x256xf32>
    %452 = arith.select %13, %451, %448 : vector<4x256xi1>, vector<4x256xf32>
    %453 = vector.extract_strided_slice %17 {offsets = [0, 20], sizes = [4, 1], strides = [1, 1]} : vector<4x36xf32> to vector<4x1xf32>
    %454 = vector.extract_strided_slice %452 {offsets = [0, 0], sizes = [1, 256], strides = [1, 1]} : vector<4x256xf32> to vector<1x256xf32>
    %455 = vector.broadcast %453 : vector<4x1xf32> to vector<4x256xf32>
    %456 = vector.broadcast %454 : vector<1x256xf32> to vector<4x256xf32>
    %457 = arith.mulf %455, %456 : vector<4x256xf32>
    %458 = arith.addf %445, %457 : vector<4x256xf32>
    %459 = vector.extract_strided_slice %17 {offsets = [0, 21], sizes = [4, 1], strides = [1, 1]} : vector<4x36xf32> to vector<4x1xf32>
    %460 = vector.extract_strided_slice %452 {offsets = [1, 0], sizes = [1, 256], strides = [1, 1]} : vector<4x256xf32> to vector<1x256xf32>
    %461 = vector.broadcast %459 : vector<4x1xf32> to vector<4x256xf32>
    %462 = vector.broadcast %460 : vector<1x256xf32> to vector<4x256xf32>
    %463 = arith.mulf %461, %462 : vector<4x256xf32>
    %464 = arith.addf %458, %463 : vector<4x256xf32>
    %465 = vector.extract_strided_slice %17 {offsets = [0, 22], sizes = [4, 1], strides = [1, 1]} : vector<4x36xf32> to vector<4x1xf32>
    %466 = vector.extract_strided_slice %452 {offsets = [2, 0], sizes = [1, 256], strides = [1, 1]} : vector<4x256xf32> to vector<1x256xf32>
    %467 = vector.broadcast %465 : vector<4x1xf32> to vector<4x256xf32>
    %468 = vector.broadcast %466 : vector<1x256xf32> to vector<4x256xf32>
    %469 = arith.mulf %467, %468 : vector<4x256xf32>
    %470 = arith.addf %464, %469 : vector<4x256xf32>
    %471 = vector.extract_strided_slice %17 {offsets = [0, 23], sizes = [4, 1], strides = [1, 1]} : vector<4x36xf32> to vector<4x1xf32>
    %472 = vector.extract_strided_slice %452 {offsets = [3, 0], sizes = [1, 256], strides = [1, 1]} : vector<4x256xf32> to vector<1x256xf32>
    %473 = vector.broadcast %471 : vector<4x1xf32> to vector<4x256xf32>
    %474 = vector.broadcast %472 : vector<1x256xf32> to vector<4x256xf32>
    %475 = arith.mulf %473, %474 : vector<4x256xf32>
    %476 = arith.addf %470, %475 : vector<4x256xf32>
    %477 = vector.extract_strided_slice %294 {offsets = [0, 16], sizes = [4, 240], strides = [1, 1]} : vector<4x256xf32> to vector<4x240xf32>
    %478 = vector.extract_strided_slice %294 {offsets = [0, 0], sizes = [4, 16], strides = [1, 1]} : vector<4x256xf32> to vector<4x16xf32>
    %479 = tpu.concatenate %477, %478 in 1 : vector<4x240xf32>, vector<4x16xf32> -> vector<4x256xf32>
    %480 = vector.extract_strided_slice %294 {offsets = [0, 240], sizes = [4, 16], strides = [1, 1]} : vector<4x256xf32> to vector<4x16xf32>
    %481 = vector.extract_strided_slice %294 {offsets = [0, 0], sizes = [4, 240], strides = [1, 1]} : vector<4x256xf32> to vector<4x240xf32>
    %482 = tpu.concatenate %480, %481 in 1 : vector<4x16xf32>, vector<4x240xf32> -> vector<4x256xf32>
    %483 = arith.select %9, %482, %479 : vector<4x256xi1>, vector<4x256xf32>
    %484 = vector.extract_strided_slice %483 {offsets = [0, 1], sizes = [4, 255], strides = [1, 1]} : vector<4x256xf32> to vector<4x255xf32>
    %485 = vector.extract_strided_slice %483 {offsets = [0, 0], sizes = [4, 1], strides = [1, 1]} : vector<4x256xf32> to vector<4x1xf32>
    %486 = tpu.concatenate %484, %485 in 1 : vector<4x255xf32>, vector<4x1xf32> -> vector<4x256xf32>
    %487 = vector.extract_strided_slice %483 {offsets = [0, 255], sizes = [4, 1], strides = [1, 1]} : vector<4x256xf32> to vector<4x1xf32>
    %488 = vector.extract_strided_slice %483 {offsets = [0, 0], sizes = [4, 255], strides = [1, 1]} : vector<4x256xf32> to vector<4x255xf32>
    %489 = tpu.concatenate %487, %488 in 1 : vector<4x1xf32>, vector<4x255xf32> -> vector<4x256xf32>
    %490 = arith.select %11, %486, %489 : vector<4x256xi1>, vector<4x256xf32>
    %491 = vector.extract_strided_slice %17 {offsets = [0, 24], sizes = [4, 1], strides = [1, 1]} : vector<4x36xf32> to vector<4x1xf32>
    %492 = vector.extract_strided_slice %490 {offsets = [0, 0], sizes = [1, 256], strides = [1, 1]} : vector<4x256xf32> to vector<1x256xf32>
    %493 = vector.broadcast %491 : vector<4x1xf32> to vector<4x256xf32>
    %494 = vector.broadcast %492 : vector<1x256xf32> to vector<4x256xf32>
    %495 = arith.mulf %493, %494 : vector<4x256xf32>
    %496 = arith.addf %476, %495 : vector<4x256xf32>
    %497 = vector.extract_strided_slice %17 {offsets = [0, 25], sizes = [4, 1], strides = [1, 1]} : vector<4x36xf32> to vector<4x1xf32>
    %498 = vector.extract_strided_slice %490 {offsets = [1, 0], sizes = [1, 256], strides = [1, 1]} : vector<4x256xf32> to vector<1x256xf32>
    %499 = vector.broadcast %497 : vector<4x1xf32> to vector<4x256xf32>
    %500 = vector.broadcast %498 : vector<1x256xf32> to vector<4x256xf32>
    %501 = arith.mulf %499, %500 : vector<4x256xf32>
    %502 = arith.addf %496, %501 : vector<4x256xf32>
    %503 = vector.extract_strided_slice %17 {offsets = [0, 26], sizes = [4, 1], strides = [1, 1]} : vector<4x36xf32> to vector<4x1xf32>
    %504 = vector.extract_strided_slice %490 {offsets = [2, 0], sizes = [1, 256], strides = [1, 1]} : vector<4x256xf32> to vector<1x256xf32>
    %505 = vector.broadcast %503 : vector<4x1xf32> to vector<4x256xf32>
    %506 = vector.broadcast %504 : vector<1x256xf32> to vector<4x256xf32>
    %507 = arith.mulf %505, %506 : vector<4x256xf32>
    %508 = arith.addf %502, %507 : vector<4x256xf32>
    %509 = vector.extract_strided_slice %17 {offsets = [0, 27], sizes = [4, 1], strides = [1, 1]} : vector<4x36xf32> to vector<4x1xf32>
    %510 = vector.extract_strided_slice %490 {offsets = [3, 0], sizes = [1, 256], strides = [1, 1]} : vector<4x256xf32> to vector<1x256xf32>
    %511 = vector.broadcast %509 : vector<4x1xf32> to vector<4x256xf32>
    %512 = vector.broadcast %510 : vector<1x256xf32> to vector<4x256xf32>
    %513 = arith.mulf %511, %512 : vector<4x256xf32>
    %514 = arith.addf %508, %513 : vector<4x256xf32>
    %515 = vector.extract_strided_slice %17 {offsets = [0, 28], sizes = [4, 1], strides = [1, 1]} : vector<4x36xf32> to vector<4x1xf32>
    %516 = vector.extract_strided_slice %483 {offsets = [0, 0], sizes = [1, 256], strides = [1, 1]} : vector<4x256xf32> to vector<1x256xf32>
    %517 = vector.broadcast %515 : vector<4x1xf32> to vector<4x256xf32>
    %518 = vector.broadcast %516 : vector<1x256xf32> to vector<4x256xf32>
    %519 = arith.mulf %517, %518 : vector<4x256xf32>
    %520 = arith.addf %514, %519 : vector<4x256xf32>
    %521 = vector.extract_strided_slice %17 {offsets = [0, 29], sizes = [4, 1], strides = [1, 1]} : vector<4x36xf32> to vector<4x1xf32>
    %522 = vector.extract_strided_slice %483 {offsets = [1, 0], sizes = [1, 256], strides = [1, 1]} : vector<4x256xf32> to vector<1x256xf32>
    %523 = vector.broadcast %521 : vector<4x1xf32> to vector<4x256xf32>
    %524 = vector.broadcast %522 : vector<1x256xf32> to vector<4x256xf32>
    %525 = arith.mulf %523, %524 : vector<4x256xf32>
    %526 = arith.addf %520, %525 : vector<4x256xf32>
    %527 = vector.extract_strided_slice %17 {offsets = [0, 30], sizes = [4, 1], strides = [1, 1]} : vector<4x36xf32> to vector<4x1xf32>
    %528 = vector.extract_strided_slice %483 {offsets = [2, 0], sizes = [1, 256], strides = [1, 1]} : vector<4x256xf32> to vector<1x256xf32>
    %529 = vector.broadcast %527 : vector<4x1xf32> to vector<4x256xf32>
    %530 = vector.broadcast %528 : vector<1x256xf32> to vector<4x256xf32>
    %531 = arith.mulf %529, %530 : vector<4x256xf32>
    %532 = arith.addf %526, %531 : vector<4x256xf32>
    %533 = vector.extract_strided_slice %17 {offsets = [0, 31], sizes = [4, 1], strides = [1, 1]} : vector<4x36xf32> to vector<4x1xf32>
    %534 = vector.extract_strided_slice %483 {offsets = [3, 0], sizes = [1, 256], strides = [1, 1]} : vector<4x256xf32> to vector<1x256xf32>
    %535 = vector.broadcast %533 : vector<4x1xf32> to vector<4x256xf32>
    %536 = vector.broadcast %534 : vector<1x256xf32> to vector<4x256xf32>
    %537 = arith.mulf %535, %536 : vector<4x256xf32>
    %538 = arith.addf %532, %537 : vector<4x256xf32>
    %539 = vector.extract_strided_slice %483 {offsets = [0, 1], sizes = [4, 255], strides = [1, 1]} : vector<4x256xf32> to vector<4x255xf32>
    %540 = vector.extract_strided_slice %483 {offsets = [0, 0], sizes = [4, 1], strides = [1, 1]} : vector<4x256xf32> to vector<4x1xf32>
    %541 = tpu.concatenate %539, %540 in 1 : vector<4x255xf32>, vector<4x1xf32> -> vector<4x256xf32>
    %542 = vector.extract_strided_slice %483 {offsets = [0, 255], sizes = [4, 1], strides = [1, 1]} : vector<4x256xf32> to vector<4x1xf32>
    %543 = vector.extract_strided_slice %483 {offsets = [0, 0], sizes = [4, 255], strides = [1, 1]} : vector<4x256xf32> to vector<4x255xf32>
    %544 = tpu.concatenate %542, %543 in 1 : vector<4x1xf32>, vector<4x255xf32> -> vector<4x256xf32>
    %545 = arith.select %13, %544, %541 : vector<4x256xi1>, vector<4x256xf32>
    %546 = vector.extract_strided_slice %17 {offsets = [0, 32], sizes = [4, 1], strides = [1, 1]} : vector<4x36xf32> to vector<4x1xf32>
    %547 = vector.extract_strided_slice %545 {offsets = [0, 0], sizes = [1, 256], strides = [1, 1]} : vector<4x256xf32> to vector<1x256xf32>
    %548 = vector.broadcast %546 : vector<4x1xf32> to vector<4x256xf32>
    %549 = vector.broadcast %547 : vector<1x256xf32> to vector<4x256xf32>
    %550 = arith.mulf %548, %549 : vector<4x256xf32>
    %551 = arith.addf %538, %550 : vector<4x256xf32>
    %552 = vector.extract_strided_slice %17 {offsets = [0, 33], sizes = [4, 1], strides = [1, 1]} : vector<4x36xf32> to vector<4x1xf32>
    %553 = vector.extract_strided_slice %545 {offsets = [1, 0], sizes = [1, 256], strides = [1, 1]} : vector<4x256xf32> to vector<1x256xf32>
    %554 = vector.broadcast %552 : vector<4x1xf32> to vector<4x256xf32>
    %555 = vector.broadcast %553 : vector<1x256xf32> to vector<4x256xf32>
    %556 = arith.mulf %554, %555 : vector<4x256xf32>
    %557 = arith.addf %551, %556 : vector<4x256xf32>
    %558 = vector.extract_strided_slice %17 {offsets = [0, 34], sizes = [4, 1], strides = [1, 1]} : vector<4x36xf32> to vector<4x1xf32>
    %559 = vector.extract_strided_slice %545 {offsets = [2, 0], sizes = [1, 256], strides = [1, 1]} : vector<4x256xf32> to vector<1x256xf32>
    %560 = vector.broadcast %558 : vector<4x1xf32> to vector<4x256xf32>
    %561 = vector.broadcast %559 : vector<1x256xf32> to vector<4x256xf32>
    %562 = arith.mulf %560, %561 : vector<4x256xf32>
    %563 = arith.addf %557, %562 : vector<4x256xf32>
    %564 = vector.extract_strided_slice %17 {offsets = [0, 35], sizes = [4, 1], strides = [1, 1]} : vector<4x36xf32> to vector<4x1xf32>
    %565 = vector.extract_strided_slice %545 {offsets = [3, 0], sizes = [1, 256], strides = [1, 1]} : vector<4x256xf32> to vector<1x256xf32>
    %566 = vector.broadcast %564 : vector<4x1xf32> to vector<4x256xf32>
    %567 = vector.broadcast %565 : vector<1x256xf32> to vector<4x256xf32>
    %568 = arith.mulf %566, %567 : vector<4x256xf32>
    %569 = arith.addf %563, %568 : vector<4x256xf32>
    %570 = arith.addf %15, %569 : vector<4x256xf32>
    %c0_15 = arith.constant 0 : index
    %c0_16 = arith.constant 0 : index
    %c0_17 = arith.constant 0 : index
    %571 = vector.load %arg7[%c0_15, %c0_16, %c0_17] : memref<1x4x256xf32, #tpu.memory_space<vmem>>, vector<1x4x256xf32>
    %572 = vector.shape_cast %571 : vector<1x4x256xf32> to vector<4x256xf32>
    %573 = vector.shape_cast %570 : vector<4x256xf32> to vector<1x4x256xf32>
    tpu.vector_store %arg7[%c0_15, %c0_16, %c0_17], %573 {strides = array<i32>} : memref<1x4x256xf32, #tpu.memory_space<vmem>>, vector<1x4x256xf32>,
    return
  }
  func.func @transform_0(%arg0: i32) -> (i32, i32) {
    %c0_i32 = arith.constant 0 : i32
    %c0_i32_0 = arith.constant 0 : i32
    %c0_i32_1 = arith.constant 0 : i32
    return %c0_i32, %c0_i32_0 : i32, i32
  }
  func.func @transform_1(%arg0: i32) -> (i32, i32, i32) {
    %c0_i32 = arith.constant 0 : i32
    %c0_i32_0 = arith.constant 0 : i32
    %c0_i32_1 = arith.constant 0 : i32
    return %arg0, %c0_i32, %c0_i32_0 : i32, i32, i32
  }
  func.func @transform_2(%arg0: i32) -> (i32, i32) {
    %c0_i32 = arith.constant 0 : i32
    %c0_i32_0 = arith.constant 0 : i32
    %c0_i32_1 = arith.constant 0 : i32
    return %c0_i32, %c0_i32_0 : i32, i32
  }
  func.func @transform_3(%arg0: i32) -> (i32, i32) {
    %c0_i32 = arith.constant 0 : i32
    %c0_i32_0 = arith.constant 0 : i32
    %c0_i32_1 = arith.constant 0 : i32
    return %c0_i32, %c0_i32_0 : i32, i32
  }
  func.func @transform_4(%arg0: i32) -> (i32, i32) {
    %c0_i32 = arith.constant 0 : i32
    %c0_i32_0 = arith.constant 0 : i32
    %c0_i32_1 = arith.constant 0 : i32
    return %c0_i32, %c0_i32_0 : i32, i32
  }
  func.func @transform_5(%arg0: i32) -> (i32, i32) {
    %c0_i32 = arith.constant 0 : i32
    %c0_i32_0 = arith.constant 0 : i32
    %c0_i32_1 = arith.constant 0 : i32
    return %c0_i32, %c0_i32_0 : i32, i32
  }
  func.func @transform_6(%arg0: i32) -> (i32, i32, i32) {
    %c0_i32 = arith.constant 0 : i32
    %c0_i32_0 = arith.constant 0 : i32
    %c0_i32_1 = arith.constant 0 : i32
    return %arg0, %c0_i32, %c0_i32_0 : i32, i32, i32
  }
}

</mosaic_0001>

<llo_original>
// kernel: resnet_block.1
$region0: #{resnet_block.1}
  #allocation0 [shape = 'u32[]', space=smem, size = 0x4, offset = 0x4, fixed_abs, tag = 'smem constant byte address 0x4 - core index']
  #allocation1 [shape = 'u32[72,128]{1,0:T(1,128)}', space=vmem, size = 0x9000, scoped, tag = 'internal scratch']
  %s0 = inlined_call_operand.vmem [shape: s32[2,256], index: 0, kind: input, shape index: {}]
  %s1 = inlined_call_operand.vmem [shape: f32[2,4,256], index: 1, kind: input, shape index: {}]
  %s2 = inlined_call_operand.vmem [shape: f32[4,36], index: 2, kind: input, shape index: {}]
  %s3 = inlined_call_operand.vmem [shape: f32[4,1], index: 3, kind: input, shape index: {}]
  %s4 = inlined_call_operand.vmem [shape: f32[4,36], index: 4, kind: input, shape index: {}]
  %s5 = inlined_call_operand.vmem [shape: f32[4,1], index: 5, kind: input, shape index: {}]
  %s6 = inlined_call_operand.vmem [shape: f32[2,4,256], index: 6, kind: output, shape index: {}]
  %s7 = sld [smem:[#allocation0]]
  $region57: #{resnet_block.1} parent=0
    _
  %s9 = ssub.s32 1, %s7
  %s10 = scalar_select 0, %s9, %s7
  loop: start=0, step=1, limit=4
  $region2: #{resnet_block.1} parent=0 // loop_pre_header
    _
  $region3: #{resnet_block.1} parent=0 // loop_header
    %s12 = sphi 0, %s16
    %p13 = scmp.ge.s32.totalorder %s12, 4
    %s20 = sphi 0, %s20
    %s22 = sphi 0, %s20
    %s23 = sphi 0, %s22
    %s37 = sphi 0, %s23
    %s43 = sphi 0, %s45
    %s46 = sphi 0, %s43
    %s47 = sphi 0, %s46
    %s63 = sphi 0, %s47
    %s67 = sphi 0, %s67
    %s69 = sphi 0, %s67
    %s70 = sphi 0, %s69
    %s84 = sphi 0, %s70
    %s88 = sphi 0, %s88
    %s90 = sphi 0, %s88
    %s91 = sphi 0, %s90
    %s105 = sphi 0, %s91
    %s109 = sphi 0, %s109
    %s111 = sphi 0, %s109
    %s112 = sphi 0, %s111
    %s126 = sphi 0, %s112
    %s130 = sphi 0, %s130
    %s132 = sphi 0, %s130
    %s133 = sphi 0, %s132
    %s147 = sphi 0, %s133
    %s153 = sphi 0, %s155
    %s156 = sphi 0, %s153
    %s157 = sphi 0, %s156
    %s173 = sphi 0, %s157
  $region4: #{resnet_block.1} parent=0 // loop_header_branch
    %15 = sbr.rel (%p13) target = $region8
  $region5: #{resnet_block.1} parent=0 // loop_body
    %s17 = ssub.s32 %s12, 1
    %s18 = ssub.s32 %s12, 2
    %s19 = sadd.s32 %s12, 1
    %s21 = sadd.s32 %s20, 1
    %p24 = scmp.eq.s32.totalorder %s12, 1
    %p25 = scmp.ne.s32.totalorder %s20, %s22
    %p26 = scmp.eq.s32.totalorder %s12, 0
    %p27 = por %p25, %p26
    %p28 = scmp.ne.s32.totalorder %s20, %s22
    %p29 = scmp.eq.s32.totalorder %s17, 1
    %p30 = por %p28, %p29
    %p31 = scmp.ne.s32.totalorder %s22, %s23
    %p32 = scmp.eq.s32.totalorder %s17, 0
    %p33 = por %p31, %p32
    %p34 = scmp.ne.s32.totalorder %s22, %s23
    %p35 = scmp.eq.s32.totalorder %s18, 1
    %p36 = por %p34, %p35
    %p38 = scmp.ne.s32.totalorder %s23, %s37
    %p39 = scmp.eq.s32.totalorder %s18, 0
    %p40 = por %p38, %p39
    %s41 = ssub.s32 %s12, %s19
    %p42 = scmp.eq.s32.totalorder %s41, 0
    %s44 = sadd.s32 %s43, 1
    %s45 = scalar_select %p42, %s43, %s44
    %p48 = pneg %p42
    %p49 = scmp.eq.s32.totalorder %s12, 1
    %p50 = por %p48, %p49
    %p51 = scmp.ne.s32.totalorder %s43, %s46
    %p52 = scmp.eq.s32.totalorder %s12, 0
    %p53 = por %p51, %p52
    %p54 = scmp.ne.s32.totalorder %s43, %s46
    %p55 = scmp.eq.s32.totalorder %s17, 1
    %p56 = por %p54, %p55
    %p57 = scmp.ne.s32.totalorder %s46, %s47
    %p58 = scmp.eq.s32.totalorder %s17, 0
    %p59 = por %p57, %p58
    %p60 = scmp.ne.s32.totalorder %s46, %s47
    %p61 = scmp.eq.s32.totalorder %s18, 1
    %p62 = por %p60, %p61
    %p64 = scmp.ne.s32.totalorder %s47, %s63
    %p65 = scmp.eq.s32.totalorder %s18, 0
    %p66 = por %p64, %p65
    %s68 = sadd.s32 %s67, 1
    %p71 = scmp.eq.s32.totalorder %s12, 1
    %p72 = scmp.ne.s32.totalorder %s67, %s69
    %p73 = scmp.eq.s32.totalorder %s12, 0
    %p74 = por %p72, %p73
    %p75 = scmp.ne.s32.totalorder %s67, %s69
    %p76 = scmp.eq.s32.totalorder %s17, 1
    %p77 = por %p75, %p76
    %p78 = scmp.ne.s32.totalorder %s69, %s70
    %p79 = scmp.eq.s32.totalorder %s17, 0
    %p80 = por %p78, %p79
    %p81 = scmp.ne.s32.totalorder %s69, %s70
    %p82 = scmp.eq.s32.totalorder %s18, 1
    %p83 = por %p81, %p82
    %p85 = scmp.ne.s32.totalorder %s70, %s84
    %p86 = scmp.eq.s32.totalorder %s18, 0
    %p87 = por %p85, %p86
    %s89 = sadd.s32 %s88, 1
    %p92 = scmp.eq.s32.totalorder %s12, 1
    %p93 = scmp.ne.s32.totalorder %s88, %s90
    %p94 = scmp.eq.s32.totalorder %s12, 0
    %p95 = por %p93, %p94
    %p96 = scmp.ne.s32.totalorder %s88, %s90
    %p97 = scmp.eq.s32.totalorder %s17, 1
    %p98 = por %p96, %p97
    %p99 = scmp.ne.s32.totalorder %s90, %s91
    %p100 = scmp.eq.s32.totalorder %s17, 0
    %p101 = por %p99, %p100
    %p102 = scmp.ne.s32.totalorder %s90, %s91
    %p103 = scmp.eq.s32.totalorder %s18, 1
    %p104 = por %p102, %p103
    %p106 = scmp.ne.s32.totalorder %s91, %s105
    %p107 = scmp.eq.s32.totalorder %s18, 0
    %p108 = por %p106, %p107
    %s110 = sadd.s32 %s109, 1
    %p113 = scmp.eq.s32.totalorder %s12, 1
    %p114 = scmp.ne.s32.totalorder %s109, %s111
    %p115 = scmp.eq.s32.totalorder %s12, 0
    %p116 = por %p114, %p115
    %p117 = scmp.ne.s32.totalorder %s109, %s111
    %p118 = scmp.eq.s32.totalorder %s17, 1
    %p119 = por %p117, %p118
    %p120 = scmp.ne.s32.totalorder %s111, %s112
    %p121 = scmp.eq.s32.totalorder %s17, 0
    %p122 = por %p120, %p121
    %p123 = scmp.ne.s32.totalorder %s111, %s112
    %p124 = scmp.eq.s32.totalorder %s18, 1
    %p125 = por %p123, %p124
    %p127 = scmp.ne.s32.totalorder %s112, %s126
    %p128 = scmp.eq.s32.totalorder %s18, 0
    %p129 = por %p127, %p128
    %s131 = sadd.s32 %s130, 1
    %p134 = scmp.eq.s32.totalorder %s12, 1
    %p135 = scmp.ne.s32.totalorder %s130, %s132
    %p136 = scmp.eq.s32.totalorder %s12, 0
    %p137 = por %p135, %p136
    %p138 = scmp.ne.s32.totalorder %s130, %s132
    %p139 = scmp.eq.s32.totalorder %s17, 1
    %p140 = por %p138, %p139
    %p141 = scmp.ne.s32.totalorder %s132, %s133
    %p142 = scmp.eq.s32.totalorder %s17, 0
    %p143 = por %p141, %p142
    %p144 = scmp.ne.s32.totalorder %s132, %s133
    %p145 = scmp.eq.s32.totalorder %s18, 1
    %p146 = por %p144, %p145
    %p148 = scmp.ne.s32.totalorder %s133, %s147
    %p149 = scmp.eq.s32.totalorder %s18, 0
    %p150 = por %p148, %p149
    %s151 = ssub.s32 %s12, %s19
    %p152 = scmp.eq.s32.totalorder %s151, 0
    %s154 = sadd.s32 %s153, 1
    %s155 = scalar_select %p152, %s153, %s154
    %p158 = pneg %p152
    %p159 = scmp.eq.s32.totalorder %s12, 1
    %p160 = por %p158, %p159
    %p161 = scmp.ne.s32.totalorder %s153, %s156
    %p162 = scmp.eq.s32.totalorder %s12, 0
    %p163 = por %p161, %p162
    %p164 = scmp.ne.s32.totalorder %s153, %s156
    %p165 = scmp.eq.s32.totalorder %s17, 1
    %p166 = por %p164, %p165
    %p167 = scmp.ne.s32.totalorder %s156, %s157
    %p168 = scmp.eq.s32.totalorder %s17, 0
    %p169 = por %p167, %p168
    %p170 = scmp.ne.s32.totalorder %s156, %s157
    %p171 = scmp.eq.s32.totalorder %s18, 1
    %p172 = por %p170, %p171
    %p174 = scmp.ne.s32.totalorder %s157, %s173
    %p175 = scmp.eq.s32.totalorder %s18, 0
    %p176 = por %p174, %p175
    %p177 = scmp.le.s32.totalorder 1, %s12
    %p178 = scmp.lt.s32.totalorder %s12, 3
    %p179 = pnand %p177, %p178
    %p180 = pneg %p179
    // Predicated region
    $region9: #{resnet_block.1} parent=5 // pred_check
      _
    $region10: #{resnet_block.1} parent=5 // pred_check_branch
      %182 = sbr.rel (%p179) target = $region12
    $region11: #{resnet_block.1} parent=5 // pred_region
      %s183 = ssub.s32 %s12, 1
      // Predicated region
      $region13: #{resnet_block.1} parent=11 // pred_check
        %p184 = pneg %p33
      $region14: #{resnet_block.1} parent=11 // pred_check_branch
        %186 = sbr.rel (%p184) target = $region16
      $region15: #{resnet_block.1} parent=11 // pred_region
        _
      $region16: #{resnet_block.1} parent=11 // pred_fallthru
        _
      // Predicated region
      $region17: #{resnet_block.1} parent=11 // pred_check
        %p187 = pneg %p80
      $region18: #{resnet_block.1} parent=11 // pred_check_branch
        %189 = sbr.rel (%p187) target = $region20
      $region19: #{resnet_block.1} parent=11 // pred_region
        _
      $region20: #{resnet_block.1} parent=11 // pred_fallthru
        _
      // Predicated region
      $region21: #{resnet_block.1} parent=11 // pred_check
        %p190 = pneg %p101
      $region22: #{resnet_block.1} parent=11 // pred_check_branch
        %192 = sbr.rel (%p190) target = $region24
      $region23: #{resnet_block.1} parent=11 // pred_region
        _
      $region24: #{resnet_block.1} parent=11 // pred_fallthru
        _
      // Predicated region
      $region25: #{resnet_block.1} parent=11 // pred_check
        %p193 = pneg %p122
      $region26: #{resnet_block.1} parent=11 // pred_check_branch
        %195 = sbr.rel (%p193) target = $region28
      $region27: #{resnet_block.1} parent=11 // pred_region
        _
      $region28: #{resnet_block.1} parent=11 // pred_fallthru
        _
      // Predicated region
      $region29: #{resnet_block.1} parent=11 // pred_check
        %p196 = pneg %p143
      $region30: #{resnet_block.1} parent=11 // pred_check_branch
        %198 = sbr.rel (%p196) target = $region32
      $region31: #{resnet_block.1} parent=11 // pred_region
        _
      $region32: #{resnet_block.1} parent=11 // pred_fallthru
        _
    $region12: #{resnet_block.1} parent=5 // pred_fallthru
      _
    %p199 = scmp.lt.s32.totalorder %s12, 2
    // Predicated region
    $region33: #{resnet_block.1} parent=5 // pred_check
      %p200 = pneg %p199
    $region34: #{resnet_block.1} parent=5 // pred_check_branch
      %202 = sbr.rel (%p200) target = $region36
    $region35: #{resnet_block.1} parent=5 // pred_region
      // Predicated region
      $region37: #{resnet_block.1} parent=35 // pred_check
        %p203 = pneg %p53
      $region38: #{resnet_block.1} parent=35 // pred_check_branch
        %205 = sbr.rel (%p203) target = $region40
      $region39: #{resnet_block.1} parent=35 // pred_region
        %p206 = scmp.lt.s32.totalorder %s12, 1
        %s207 = scalar_select %p206, %s12, 1
        %s208 = smul.addr %s207, 2
        %s209 = smul.addr %s208, 4
        %s210 = scalar_lea.vmem %s1, %s209
      $region40: #{resnet_block.1} parent=35 // pred_fallthru
        _
    $region36: #{resnet_block.1} parent=5 // pred_fallthru
      _
    %p211 = scmp.le.s32.totalorder 1, %s12
    %p212 = scmp.lt.s32.totalorder %s12, 3
    %p213 = pnand %p211, %p212
    %p214 = pneg %p213
    // Predicated region
    $region41: #{resnet_block.1} parent=5 // pred_check
      _
    $region42: #{resnet_block.1} parent=5 // pred_check_branch
      %216 = sbr.rel (%p213) target = $region44
    $region43: #{resnet_block.1} parent=5 // pred_region
      %s217 = ssub.s32 %s12, 1
      %p218 = pneg %p33
      %p219 = pneg %p30
      %p220 = scmp.lt.s32.totalorder %s17, 1
      %s221 = scalar_select %p220, %s17, 1
      %s222 = smul.addr %s221, 2
      %s223 = smul.addr %s222, 4
      %s224 = scalar_lea.vmem %s1, %s223
      %p225 = pneg %p59
      %p226 = pneg %p56
      %p227 = pneg %p80
      %p228 = pneg %p77
      %p229 = pneg %p101
      %p230 = pneg %p98
      %p231 = pneg %p122
      %p232 = pneg %p119
      %p233 = pneg %p143
      %p234 = pneg %p140
      %p235 = pneg %p169
      %p236 = pneg %p166
      %p237 = scmp.lt.s32.totalorder %s17, 1
      %s238 = scalar_select %p237, %s17, 1
      %s239 = smul.addr %s238, 2
      %s240 = smul.addr %s239, 4
      %s241 = scalar_lea.vmem %s6, %s240
      %p242 = scmp.lt.s32.totalorder %s17, 1
      %s243 = scalar_select %p242, %s17, 1
      %s244 = smul.addr %s243, 2
      %s245 = smul.addr %s244, 4
      %s246 = scalar_lea.vmem %s1, %s245
      %p247 = scmp.lt.s32.totalorder %s17, 1
      %s248 = scalar_select %p247, %s17, 1
      %s249 = smul.addr %s248, 2
      %s250 = smul.addr %s249, 4
      %s251 = scalar_lea.vmem %s6, %s250
      %v252 = vld [vmem:[%s0] ss:$2 sm:$0x3]
      %v253 = vperm.slane %v252, 0
      %v254 = vperm.slane %v252, 1
      %s255 = scalar_lea.vmem %s0, 1
      %v256 = vld [vmem:[%s255] ss:$2 sm:$0x3]
      %v257 = vperm.slane %v256, 0
      %v258 = vperm.slane %v256, 1
      %vm259 = vcmp.eq.s32.totalorder %v253, 0
      %vm260 = vcmp.eq.s32.totalorder %v254, 0
      %vm261 = vcmp.eq.s32.totalorder %v253, 15
      %vm262 = vcmp.eq.s32.totalorder %v254, 15
      %vm263 = vcmp.eq.s32.totalorder %v257, 0
      %vm264 = vcmp.eq.s32.totalorder %v258, 0
      %vm265 = vcmp.eq.s32.totalorder %v257, 15
      %vm266 = vcmp.eq.s32.totalorder %v258, 15
      %v267 = vld [vmem:[%s246] sm:$0xff]
      %v268 = vld [vmem:[%s2] sm:$0xf]
      %v269 = vld [vmem:[%s4] sm:$0xf]
      %v270 = vld [vmem:[%s3] sm:$0xf]
      %272 = vset.pattern.permute.xlu0 0
      %273 = vperm.xlu0 %272, %v270
      %v274 = vpop.permute.xlu0 %273
      %277 = vst [vmem:[#allocation1] ss:$2 sm:$0xff] %v267
      %v278 = vld.sshfl [vmem:[#allocation1] sm:$0xff pattern:$0x75316420]
      %v279 = vld.sshfl [vmem:[#allocation1 + $0x8] sm:$0xff pattern:$0x75316420]
      %280 = vrot.lane.b32.xlu0 %v278, 112
      %v281 = vpop.permute.xlu0 %280
      %282 = vrot.lane.b32.xlu0 %v279, 112
      %v283 = vpop.permute.xlu0 %282
      %vm284 = vcmask 916480
      %v285 = vsel %vm284, %v281, %v283
      %288 = vst [vmem:[#allocation1] ss:$2 sm:$0xff] %v267
      %v289 = vld.sshfl [vmem:[#allocation1] sm:$0xff pattern:$0x75316420]
      %290 = vrot.lane.b32.xlu0 %v289, 112
      %v291 = vpop.permute.xlu0 %290
      %v293 = vsel %vm284, %v283, %v291
      %294 = vst [vmem:[#allocation1] ss:$2 sm:$0xff] %v267
      %v295 = vld.sshfl [vmem:[#allocation1 + $0x8] sm:$0xff pattern:$0x75316420]
      %296 = vrot.lane.b32.xlu0 %v295, 16
      %v297 = vpop.permute.xlu0 %296
      %299 = vst [vmem:[#allocation1] ss:$2 sm:$0xff] %v267
      %v300 = vld.sshfl [vmem:[#allocation1] sm:$0xff pattern:$0x75316420]
      %v301 = vld.sshfl [vmem:[#allocation1 + $0x8] sm:$0xff pattern:$0x75316420]
      %302 = vrot.lane.b32.xlu0 %v300, 16
      %v303 = vpop.permute.xlu0 %302
      %304 = vrot.lane.b32.xlu0 %v301, 16
      %v305 = vpop.permute.xlu0 %304
      %vm306 = vcmask 130048
      %v307 = vsel %vm306, %v303, %v305
      %v310 = vsel %vm306, %v297, %v303
      %v311 = vsel %vm259, %v285, %v310
      %v312 = vsel %vm260, %v293, %v307
      %315 = vrot.lane.b32.xlu0 %v311, 127
      %v316 = vpop.permute.xlu0 %315
      %317 = vrot.lane.b32.xlu0 %v312, 127
      %v318 = vpop.permute.xlu0 %317
      %vm319 = vcmask 1039360
      %v320 = vsel %vm319, %v316, %v318
      %v324 = vsel %vm319, %v318, %v316
      %325 = vrot.lane.b32.xlu0 %v312, 1
      %v326 = vpop.permute.xlu0 %325
      %328 = vrot.lane.b32.xlu0 %v311, 1
      %v329 = vpop.permute.xlu0 %328
      %vm330 = vcmask 7168
      %v331 = vsel %vm330, %v329, %v326
      %v334 = vsel %vm330, %v326, %v329
      %v335 = vsel %vm263, %v320, %v334
      %v336 = vsel %vm264, %v324, %v331
      %338 = vset.pattern.permute.xlu0 0
      %339 = vperm.xlu0 %338, %v268
      %v340 = vpop.permute.xlu0 %339
      %v342 = vperm.slane %v335, 0
      %v343 = vperm.slane %v336, 0
      %v344 = vmul.f32 %v340, %v342
      %v345 = vmul.f32 %v340, %v343
      %v346 = vadd.f32 %v274, %v344
      %v347 = vadd.f32 %v274, %v345
      %348 = vset.pattern.permute.xlu0 1
      %349 = vperm.xlu0 %348, %v268
      %v350 = vpop.permute.xlu0 %349
      %v352 = vperm.slane %v335, 1
      %v353 = vperm.slane %v336, 1
      %v354 = vmul.f32 %v350, %v352
      %v355 = vmul.f32 %v350, %v353
      %v356 = vadd.f32 %v346, %v354
      %v357 = vadd.f32 %v347, %v355
      %358 = vset.pattern.permute.xlu0 2
      %359 = vperm.xlu0 %358, %v268
      %v360 = vpop.permute.xlu0 %359
      %v362 = vperm.slane %v335, 2
      %v363 = vperm.slane %v336, 2
      %v364 = vmul.f32 %v360, %v362
      %v365 = vmul.f32 %v360, %v363
      %v366 = vadd.f32 %v356, %v364
      %v367 = vadd.f32 %v357, %v365
      %368 = vset.pattern.permute.xlu0 3
      %369 = vperm.xlu0 %368, %v268
      %v370 = vpop.permute.xlu0 %369
      %v372 = vperm.slane %v335, 3
      %v373 = vperm.slane %v336, 3
      %v374 = vmul.f32 %v370, %v372
      %v375 = vmul.f32 %v370, %v373
      %v376 = vadd.f32 %v366, %v374
      %v377 = vadd.f32 %v367, %v375
      %378 = vset.pattern.permute.xlu0 4
      %379 = vperm.xlu0 %378, %v268
      %v380 = vpop.permute.xlu0 %379
      %v382 = vperm.slane %v311, 0
      %v383 = vperm.slane %v312, 0
      %v384 = vmul.f32 %v380, %v382
      %v385 = vmul.f32 %v380, %v383
      %v386 = vadd.f32 %v376, %v384
      %v387 = vadd.f32 %v377, %v385
      %388 = vset.pattern.permute.xlu0 5
      %389 = vperm.xlu0 %388, %v268
      %v390 = vpop.permute.xlu0 %389
      %v392 = vperm.slane %v311, 1
      %v393 = vperm.slane %v312, 1
      %v394 = vmul.f32 %v390, %v392
      %v395 = vmul.f32 %v390, %v393
      %v396 = vadd.f32 %v386, %v394
      %v397 = vadd.f32 %v387, %v395
      %398 = vset.pattern.permute.xlu0 6
      %399 = vperm.xlu0 %398, %v268
      %v400 = vpop.permute.xlu0 %399
      %v402 = vperm.slane %v311, 2
      %v403 = vperm.slane %v312, 2
      %v404 = vmul.f32 %v400, %v402
      %v405 = vmul.f32 %v400, %v403
      %v406 = vadd.f32 %v396, %v404
      %v407 = vadd.f32 %v397, %v405
      %408 = vset.pattern.permute.xlu0 7
      %409 = vperm.xlu0 %408, %v268
      %v410 = vpop.permute.xlu0 %409
      %v412 = vperm.slane %v311, 3
      %v413 = vperm.slane %v312, 3
      %v414 = vmul.f32 %v410, %v412
      %v415 = vmul.f32 %v410, %v413
      %v416 = vadd.f32 %v406, %v414
      %v417 = vadd.f32 %v407, %v415
      %v418 = vsel %vm265, %v334, %v320
      %v419 = vsel %vm266, %v331, %v324
      %420 = vset.pattern.permute.xlu0 8
      %421 = vperm.xlu0 %420, %v268
      %v422 = vpop.permute.xlu0 %421
      %v424 = vperm.slane %v418, 0
      %v425 = vperm.slane %v419, 0
      %v426 = vmul.f32 %v422, %v424
      %v427 = vmul.f32 %v422, %v425
      %v428 = vadd.f32 %v416, %v426
      %v429 = vadd.f32 %v417, %v427
      %430 = vset.pattern.permute.xlu0 9
      %431 = vperm.xlu0 %430, %v268
      %v432 = vpop.permute.xlu0 %431
      %v434 = vperm.slane %v418, 1
      %v435 = vperm.slane %v419, 1
      %v436 = vmul.f32 %v432, %v434
      %v437 = vmul.f32 %v432, %v435
      %v438 = vadd.f32 %v428, %v436
      %v439 = vadd.f32 %v429, %v437
      %440 = vset.pattern.permute.xlu0 10
      %441 = vperm.xlu0 %440, %v268
      %v442 = vpop.permute.xlu0 %441
      %v444 = vperm.slane %v418, 2
      %v445 = vperm.slane %v419, 2
      %v446 = vmul.f32 %v442, %v444
      %v447 = vmul.f32 %v442, %v445
      %v448 = vadd.f32 %v438, %v446
      %v449 = vadd.f32 %v439, %v447
      %450 = vset.pattern.permute.xlu0 11
      %451 = vperm.xlu0 %450, %v268
      %v452 = vpop.permute.xlu0 %451
      %v454 = vperm.slane %v418, 3
      %v455 = vperm.slane %v419, 3
      %v456 = vmul.f32 %v452, %v454
      %v457 = vmul.f32 %v452, %v455
      %v458 = vadd.f32 %v448, %v456
      %v459 = vadd.f32 %v449, %v457
      %460 = vst [vmem:[#allocation1] ss:$2 sm:$0xff] %v267
      %v461 = vld.sshfl [vmem:[#allocation1] sm:$0xff pattern:$0x75316420]
      %v462 = vld.sshfl [vmem:[#allocation1 + $0x8] sm:$0xff pattern:$0x75316420]
      %463 = vrot.lane.b32.xlu0 %v461, 127
      %v464 = vpop.permute.xlu0 %463
      %465 = vrot.lane.b32.xlu0 %v462, 127
      %v466 = vpop.permute.xlu0 %465
      %v467 = vsel %vm319, %v464, %v466
      %470 = vst [vmem:[#allocation1] ss:$2 sm:$0xff] %v267
      %v471 = vld.sshfl [vmem:[#allocation1] sm:$0xff pattern:$0x75316420]
      %472 = vrot.lane.b32.xlu0 %v471, 127
      %v473 = vpop.permute.xlu0 %472
      %v475 = vsel %vm319, %v466, %v473
      %476 = vst [vmem:[#allocation1] ss:$2 sm:$0xff] %v267
      %v477 = vld.sshfl [vmem:[#allocation1 + $0x8] sm:$0xff pattern:$0x75316420]
      %478 = vrot.lane.b32.xlu0 %v477, 1
      %v479 = vpop.permute.xlu0 %478
      %481 = vst [vmem:[#allocation1] ss:$2 sm:$0xff] %v267
      %v482 = vld.sshfl [vmem:[#allocation1] sm:$0xff pattern:$0x75316420]
      %v483 = vld.sshfl [vmem:[#allocation1 + $0x8] sm:$0xff pattern:$0x75316420]
      %484 = vrot.lane.b32.xlu0 %v482, 1
      %v485 = vpop.permute.xlu0 %484
      %486 = vrot.lane.b32.xlu0 %v483, 1
      %v487 = vpop.permute.xlu0 %486
      %v488 = vsel %vm330, %v485, %v487
      %v491 = vsel %vm330, %v479, %v485
      %v492 = vsel %vm263, %v467, %v491
      %v493 = vsel %vm264, %v475, %v488
      %494 = vset.pattern.permute.xlu0 12
      %495 = vperm.xlu0 %494, %v268
      %v496 = vpop.permute.xlu0 %495
      %v498 = vperm.slane %v492, 0
      %v499 = vperm.slane %v493, 0
      %v500 = vmul.f32 %v496, %v498
      %v501 = vmul.f32 %v496, %v499
      %v502 = vadd.f32 %v458, %v500
      %v503 = vadd.f32 %v459, %v501
      %504 = vset.pattern.permute.xlu0 13
      %505 = vperm.xlu0 %504, %v268
      %v506 = vpop.permute.xlu0 %505
      %v508 = vperm.slane %v492, 1
      %v509 = vperm.slane %v493, 1
      %v510 = vmul.f32 %v506, %v508
      %v511 = vmul.f32 %v506, %v509
      %v512 = vadd.f32 %v502, %v510
      %v513 = vadd.f32 %v503, %v511
      %514 = vset.pattern.permute.xlu0 14
      %515 = vperm.xlu0 %514, %v268
      %v516 = vpop.permute.xlu0 %515
      %v518 = vperm.slane %v492, 2
      %v519 = vperm.slane %v493, 2
      %v520 = vmul.f32 %v516, %v518
      %v521 = vmul.f32 %v516, %v519
      %v522 = vadd.f32 %v512, %v520
      %v523 = vadd.f32 %v513, %v521
      %524 = vset.pattern.permute.xlu0 15
      %525 = vperm.xlu0 %524, %v268
      %v526 = vpop.permute.xlu0 %525
      %v528 = vperm.slane %v492, 3
      %v529 = vperm.slane %v493, 3
      %v530 = vmul.f32 %v526, %v528
      %v531 = vmul.f32 %v526, %v529
      %v532 = vadd.f32 %v522, %v530
      %v533 = vadd.f32 %v523, %v531
      %534 = vset.pattern.permute.xlu0 16
      %535 = vperm.xlu0 %534, %v268
      %v536 = vpop.permute.xlu0 %535
      %v538 = vperm.slane %v267, 0
      %v539 = vperm.slane %v267, 4
      %v542 = vperm.slane %v538, 0
      %v543 = vperm.slane %v539, 0
      %v544 = vmul.f32 %v536, %v542
      %v545 = vmul.f32 %v536, %v543
      %v546 = vadd.f32 %v532, %v544
      %v547 = vadd.f32 %v533, %v545
      %548 = vset.pattern.permute.xlu0 17
      %549 = vperm.xlu0 %548, %v268
      %v550 = vpop.permute.xlu0 %549
      %v552 = vperm.slane %v267, 1
      %v553 = vperm.slane %v267, 5
      %v556 = vperm.slane %v552, 1
      %v557 = vperm.slane %v553, 1
      %v558 = vmul.f32 %v550, %v556
      %v559 = vmul.f32 %v550, %v557
      %v560 = vadd.f32 %v546, %v558
      %v561 = vadd.f32 %v547, %v559
      %562 = vset.pattern.permute.xlu0 18
      %563 = vperm.xlu0 %562, %v268
      %v564 = vpop.permute.xlu0 %563
      %v566 = vperm.slane %v267, 2
      %v567 = vperm.slane %v267, 6
      %v570 = vperm.slane %v566, 2
      %v571 = vperm.slane %v567, 2
      %v572 = vmul.f32 %v564, %v570
      %v573 = vmul.f32 %v564, %v571
      %v574 = vadd.f32 %v560, %v572
      %v575 = vadd.f32 %v561, %v573
      %576 = vset.pattern.permute.xlu0 19
      %577 = vperm.xlu0 %576, %v268
      %v578 = vpop.permute.xlu0 %577
      %v580 = vperm.slane %v267, 3
      %v581 = vperm.slane %v267, 7
      %v584 = vperm.slane %v580, 3
      %v585 = vperm.slane %v581, 3
      %v586 = vmul.f32 %v578, %v584
      %v587 = vmul.f32 %v578, %v585
      %v588 = vadd.f32 %v574, %v586
      %v589 = vadd.f32 %v575, %v587
      %v590 = vsel %vm265, %v491, %v467
      %v591 = vsel %vm266, %v488, %v475
      %592 = vset.pattern.permute.xlu0 20
      %593 = vperm.xlu0 %592, %v268
      %v594 = vpop.permute.xlu0 %593
      %v596 = vperm.slane %v590, 0
      %v597 = vperm.slane %v591, 0
      %v598 = vmul.f32 %v594, %v596
      %v599 = vmul.f32 %v594, %v597
      %v600 = vadd.f32 %v588, %v598
      %v601 = vadd.f32 %v589, %v599
      %602 = vset.pattern.permute.xlu0 21
      %603 = vperm.xlu0 %602, %v268
      %v604 = vpop.permute.xlu0 %603
      %v606 = vperm.slane %v590, 1
      %v607 = vperm.slane %v591, 1
      %v608 = vmul.f32 %v604, %v606
      %v609 = vmul.f32 %v604, %v607
      %v610 = vadd.f32 %v600, %v608
      %v611 = vadd.f32 %v601, %v609
      %612 = vset.pattern.permute.xlu0 22
      %613 = vperm.xlu0 %612, %v268
      %v614 = vpop.permute.xlu0 %613
      %v616 = vperm.slane %v590, 2
      %v617 = vperm.slane %v591, 2
      %v618 = vmul.f32 %v614, %v616
      %v619 = vmul.f32 %v614, %v617
      %v620 = vadd.f32 %v610, %v618
      %v621 = vadd.f32 %v611, %v619
      %622 = vset.pattern.permute.xlu0 23
      %623 = vperm.xlu0 %622, %v268
      %v624 = vpop.permute.xlu0 %623
      %v626 = vperm.slane %v590, 3
      %v627 = vperm.slane %v591, 3
      %v628 = vmul.f32 %v624, %v626
      %v629 = vmul.f32 %v624, %v627
      %v630 = vadd.f32 %v620, %v628
      %v631 = vadd.f32 %v621, %v629
      %v632 = vsel %vm261, %v310, %v285
      %v633 = vsel %vm262, %v307, %v293
      %636 = vrot.lane.b32.xlu0 %v632, 127
      %v637 = vpop.permute.xlu0 %636
      %638 = vrot.lane.b32.xlu0 %v633, 127
      %v639 = vpop.permute.xlu0 %638
      %v640 = vsel %vm319, %v637, %v639
      %v644 = vsel %vm319, %v639, %v637
      %645 = vrot.lane.b32.xlu0 %v633, 1
      %v646 = vpop.permute.xlu0 %645
      %648 = vrot.lane.b32.xlu0 %v632, 1
      %v649 = vpop.permute.xlu0 %648
      %v650 = vsel %vm330, %v649, %v646
      %v653 = vsel %vm330, %v646, %v649
      %v654 = vsel %vm263, %v640, %v653
      %v655 = vsel %vm264, %v644, %v650
      %656 = vset.pattern.permute.xlu0 24
      %657 = vperm.xlu0 %656, %v268
      %v658 = vpop.permute.xlu0 %657
      %v660 = vperm.slane %v654, 0
      %v661 = vperm.slane %v655, 0
      %v662 = vmul.f32 %v658, %v660
      %v663 = vmul.f32 %v658, %v661
      %v664 = vadd.f32 %v630, %v662
      %v665 = vadd.f32 %v631, %v663
      %666 = vset.pattern.permute.xlu0 25
      %667 = vperm.xlu0 %666, %v268
      %v668 = vpop.permute.xlu0 %667
      %v670 = vperm.slane %v654, 1
      %v671 = vperm.slane %v655, 1
      %v672 = vmul.f32 %v668, %v670
      %v673 = vmul.f32 %v668, %v671
      %v674 = vadd.f32 %v664, %v672
      %v675 = vadd.f32 %v665, %v673
      %676 = vset.pattern.permute.xlu0 26
      %677 = vperm.xlu0 %676, %v268
      %v678 = vpop.permute.xlu0 %677
      %v680 = vperm.slane %v654, 2
      %v681 = vperm.slane %v655, 2
      %v682 = vmul.f32 %v678, %v680
      %v683 = vmul.f32 %v678, %v681
      %v684 = vadd.f32 %v674, %v682
      %v685 = vadd.f32 %v675, %v683
      %686 = vset.pattern.permute.xlu0 27
      %687 = vperm.xlu0 %686, %v268
      %v688 = vpop.permute.xlu0 %687
      %v690 = vperm.slane %v654, 3
      %v691 = vperm.slane %v655, 3
      %v692 = vmul.f32 %v688, %v690
      %v693 = vmul.f32 %v688, %v691
      %v694 = vadd.f32 %v684, %v692
      %v695 = vadd.f32 %v685, %v693
      %696 = vset.pattern.permute.xlu0 28
      %697 = vperm.xlu0 %696, %v268
      %v698 = vpop.permute.xlu0 %697
      %v700 = vperm.slane %v632, 0
      %v701 = vperm.slane %v633, 0
      %v702 = vmul.f32 %v698, %v700
      %v703 = vmul.f32 %v698, %v701
      %v704 = vadd.f32 %v694, %v702
      %v705 = vadd.f32 %v695, %v703
      %706 = vset.pattern.permute.xlu0 29
      %707 = vperm.xlu0 %706, %v268
      %v708 = vpop.permute.xlu0 %707
      %v710 = vperm.slane %v632, 1
      %v711 = vperm.slane %v633, 1
      %v712 = vmul.f32 %v708, %v710
      %v713 = vmul.f32 %v708, %v711
      %v714 = vadd.f32 %v704, %v712
      %v715 = vadd.f32 %v705, %v713
      %716 = vset.pattern.permute.xlu0 30
      %717 = vperm.xlu0 %716, %v268
      %v718 = vpop.permute.xlu0 %717
      %v720 = vperm.slane %v632, 2
      %v721 = vperm.slane %v633, 2
      %v722 = vmul.f32 %v718, %v720
      %v723 = vmul.f32 %v718, %v721
      %v724 = vadd.f32 %v714, %v722
      %v725 = vadd.f32 %v715, %v723
      %726 = vset.pattern.permute.xlu0 31
      %727 = vperm.xlu0 %726, %v268
      %v728 = vpop.permute.xlu0 %727
      %v730 = vperm.slane %v632, 3
      %v731 = vperm.slane %v633, 3
      %v732 = vmul.f32 %v728, %v730
      %v733 = vmul.f32 %v728, %v731
      %v734 = vadd.f32 %v724, %v732
      %v735 = vadd.f32 %v725, %v733
      %v736 = vsel %vm265, %v653, %v640
      %v737 = vsel %vm266, %v650, %v644
      %738 = vset.pattern.permute.xlu0 32
      %739 = vperm.xlu0 %738, %v268
      %v740 = vpop.permute.xlu0 %739
      %v742 = vperm.slane %v736, 0
      %v743 = vperm.slane %v737, 0
      %v744 = vmul.f32 %v740, %v742
      %v745 = vmul.f32 %v740, %v743
      %v746 = vadd.f32 %v734, %v744
      %v747 = vadd.f32 %v735, %v745
      %748 = vset.pattern.permute.xlu0 33
      %749 = vperm.xlu0 %748, %v268
      %v750 = vpop.permute.xlu0 %749
      %v752 = vperm.slane %v736, 1
      %v753 = vperm.slane %v737, 1
      %v754 = vmul.f32 %v750, %v752
      %v755 = vmul.f32 %v750, %v753
      %v756 = vadd.f32 %v746, %v754
      %v757 = vadd.f32 %v747, %v755
      %758 = vset.pattern.permute.xlu0 34
      %759 = vperm.xlu0 %758, %v268
      %v760 = vpop.permute.xlu0 %759
      %v762 = vperm.slane %v736, 2
      %v763 = vperm.slane %v737, 2
      %v764 = vmul.f32 %v760, %v762
      %v765 = vmul.f32 %v760, %v763
      %v766 = vadd.f32 %v756, %v764
      %v767 = vadd.f32 %v757, %v765
      %768 = vset.pattern.permute.xlu0 35
      %769 = vperm.xlu0 %768, %v268
      %v770 = vpop.permute.xlu0 %769
      %v772 = vperm.slane %v736, 3
      %v773 = vperm.slane %v737, 3
      %v774 = vmul.f32 %v770, %v772
      %v775 = vmul.f32 %v770, %v773
      %v776 = vadd.f32 %v766, %v774
      %v777 = vadd.f32 %v767, %v775
      %v778 = vmax.f32 %v776, 0.0
      %v779 = vmax.f32 %v777, 0.0
      %v780 = vld [vmem:[%s5] sm:$0xf]
      %782 = vset.pattern.permute.xlu0 0
      %783 = vperm.xlu0 %782, %v780
      %v784 = vpop.permute.xlu0 %783
      %788 = vrot.lane.b32.xlu0 %v778, 112
      %v789 = vpop.permute.xlu0 %788
      %790 = vrot.lane.b32.xlu0 %v779, 112
      %v791 = vpop.permute.xlu0 %790
      %v792 = vsel %vm284, %v789, %v791
      %v796 = vsel %vm284, %v791, %v789
      %797 = vrot.lane.b32.xlu0 %v779, 16
      %v798 = vpop.permute.xlu0 %797
      %800 = vrot.lane.b32.xlu0 %v778, 16
      %v801 = vpop.permute.xlu0 %800
      %v802 = vsel %vm306, %v801, %v798
      %v805 = vsel %vm306, %v798, %v801
      %v806 = vsel %vm259, %v792, %v805
      %v807 = vsel %vm260, %v796, %v802
      %810 = vrot.lane.b32.xlu0 %v806, 127
      %v811 = vpop.permute.xlu0 %810
      %812 = vrot.lane.b32.xlu0 %v807, 127
      %v813 = vpop.permute.xlu0 %812
      %v814 = vsel %vm319, %v811, %v813
      %v818 = vsel %vm319, %v813, %v811
      %819 = vrot.lane.b32.xlu0 %v807, 1
      %v820 = vpop.permute.xlu0 %819
      %822 = vrot.lane.b32.xlu0 %v806, 1
      %v823 = vpop.permute.xlu0 %822
      %v824 = vsel %vm330, %v823, %v820
      %v827 = vsel %vm330, %v820, %v823
      %v828 = vsel %vm263, %v814, %v827
      %v829 = vsel %vm264, %v818, %v824
      %831 = vset.pattern.permute.xlu0 0
      %832 = vperm.xlu0 %831, %v269
      %v833 = vpop.permute.xlu0 %832
      %v835 = vperm.slane %v828, 0
      %v836 = vperm.slane %v829, 0
      %v837 = vmul.f32 %v833, %v835
      %v838 = vmul.f32 %v833, %v836
      %v839 = vadd.f32 %v784, %v837
      %v840 = vadd.f32 %v784, %v838
      %841 = vset.pattern.permute.xlu0 1
      %842 = vperm.xlu0 %841, %v269
      %v843 = vpop.permute.xlu0 %842
      %v845 = vperm.slane %v828, 1
      %v846 = vperm.slane %v829, 1
      %v847 = vmul.f32 %v843, %v845
      %v848 = vmul.f32 %v843, %v846
      %v849 = vadd.f32 %v839, %v847
      %v850 = vadd.f32 %v840, %v848
      %851 = vset.pattern.permute.xlu0 2
      %852 = vperm.xlu0 %851, %v269
      %v853 = vpop.permute.xlu0 %852
      %v855 = vperm.slane %v828, 2
      %v856 = vperm.slane %v829, 2
      %v857 = vmul.f32 %v853, %v855
      %v858 = vmul.f32 %v853, %v856
      %v859 = vadd.f32 %v849, %v857
      %v860 = vadd.f32 %v850, %v858
      %861 = vset.pattern.permute.xlu0 3
      %862 = vperm.xlu0 %861, %v269
      %v863 = vpop.permute.xlu0 %862
      %v865 = vperm.slane %v828, 3
      %v866 = vperm.slane %v829, 3
      %v867 = vmul.f32 %v863, %v865
      %v868 = vmul.f32 %v863, %v866
      %v869 = vadd.f32 %v859, %v867
      %v870 = vadd.f32 %v860, %v868
      %871 = vset.pattern.permute.xlu0 4
      %872 = vperm.xlu0 %871, %v269
      %v873 = vpop.permute.xlu0 %872
      %v875 = vperm.slane %v806, 0
      %v876 = vperm.slane %v807, 0
      %v877 = vmul.f32 %v873, %v875
      %v878 = vmul.f32 %v873, %v876
      %v879 = vadd.f32 %v869, %v877
      %v880 = vadd.f32 %v870, %v878
      %881 = vset.pattern.permute.xlu0 5
      %882 = vperm.xlu0 %881, %v269
      %v883 = vpop.permute.xlu0 %882
      %v885 = vperm.slane %v806, 1
      %v886 = vperm.slane %v807, 1
      %v887 = vmul.f32 %v883, %v885
      %v888 = vmul.f32 %v883, %v886
      %v889 = vadd.f32 %v879, %v887
      %v890 = vadd.f32 %v880, %v888
      %891 = vset.pattern.permute.xlu0 6
      %892 = vperm.xlu0 %891, %v269
      %v893 = vpop.permute.xlu0 %892
      %v895 = vperm.slane %v806, 2
      %v896 = vperm.slane %v807, 2
      %v897 = vmul.f32 %v893, %v895
      %v898 = vmul.f32 %v893, %v896
      %v899 = vadd.f32 %v889, %v897
      %v900 = vadd.f32 %v890, %v898
      %901 = vset.pattern.permute.xlu0 7
      %902 = vperm.xlu0 %901, %v269
      %v903 = vpop.permute.xlu0 %902
      %v905 = vperm.slane %v806, 3
      %v906 = vperm.slane %v807, 3
      %v907 = vmul.f32 %v903, %v905
      %v908 = vmul.f32 %v903, %v906
      %v909 = vadd.f32 %v899, %v907
      %v910 = vadd.f32 %v900, %v908
      %v911 = vsel %vm265, %v827, %v814
      %v912 = vsel %vm266, %v824, %v818
      %913 = vset.pattern.permute.xlu0 8
      %914 = vperm.xlu0 %913, %v269
      %v915 = vpop.permute.xlu0 %914
      %v917 = vperm.slane %v911, 0
      %v918 = vperm.slane %v912, 0
      %v919 = vmul.f32 %v915, %v917
      %v920 = vmul.f32 %v915, %v918
      %v921 = vadd.f32 %v909, %v919
      %v922 = vadd.f32 %v910, %v920
      %923 = vset.pattern.permute.xlu0 9
      %924 = vperm.xlu0 %923, %v269
      %v925 = vpop.permute.xlu0 %924
      %v927 = vperm.slane %v911, 1
      %v928 = vperm.slane %v912, 1
      %v929 = vmul.f32 %v925, %v927
      %v930 = vmul.f32 %v925, %v928
      %v931 = vadd.f32 %v921, %v929
      %v932 = vadd.f32 %v922, %v930
      %933 = vset.pattern.permute.xlu0 10
      %934 = vperm.xlu0 %933, %v269
      %v935 = vpop.permute.xlu0 %934
      %v937 = vperm.slane %v911, 2
      %v938 = vperm.slane %v912, 2
      %v939 = vmul.f32 %v935, %v937
      %v940 = vmul.f32 %v935, %v938
      %v941 = vadd.f32 %v931, %v939
      %v942 = vadd.f32 %v932, %v940
      %943 = vset.pattern.permute.xlu0 11
      %944 = vperm.xlu0 %943, %v269
      %v945 = vpop.permute.xlu0 %944
      %v947 = vperm.slane %v911, 3
      %v948 = vperm.slane %v912, 3
      %v949 = vmul.f32 %v945, %v947
      %v950 = vmul.f32 %v945, %v948
      %v951 = vadd.f32 %v941, %v949
      %v952 = vadd.f32 %v942, %v950
      %953 = vrot.lane.b32.xlu0 %v778, 127
      %v954 = vpop.permute.xlu0 %953
      %955 = vrot.lane.b32.xlu0 %v779, 127
      %v956 = vpop.permute.xlu0 %955
      %v957 = vsel %vm319, %v954, %v956
      %v961 = vsel %vm319, %v956, %v954
      %962 = vrot.lane.b32.xlu0 %v779, 1
      %v963 = vpop.permute.xlu0 %962
      %965 = vrot.lane.b32.xlu0 %v778, 1
      %v966 = vpop.permute.xlu0 %965
      %v967 = vsel %vm330, %v966, %v963
      %v970 = vsel %vm330, %v963, %v966
      %v971 = vsel %vm263, %v957, %v970
      %v972 = vsel %vm264, %v961, %v967
      %973 = vset.pattern.permute.xlu0 12
      %974 = vperm.xlu0 %973, %v269
      %v975 = vpop.permute.xlu0 %974
      %v977 = vperm.slane %v971, 0
      %v978 = vperm.slane %v972, 0
      %v979 = vmul.f32 %v975, %v977
      %v980 = vmul.f32 %v975, %v978
      %v981 = vadd.f32 %v951, %v979
      %v982 = vadd.f32 %v952, %v980
      %983 = vset.pattern.permute.xlu0 13
      %984 = vperm.xlu0 %983, %v269
      %v985 = vpop.permute.xlu0 %984
      %v987 = vperm.slane %v971, 1
      %v988 = vperm.slane %v972, 1
      %v989 = vmul.f32 %v985, %v987
      %v990 = vmul.f32 %v985, %v988
      %v991 = vadd.f32 %v981, %v989
      %v992 = vadd.f32 %v982, %v990
      %993 = vset.pattern.permute.xlu0 14
      %994 = vperm.xlu0 %993, %v269
      %v995 = vpop.permute.xlu0 %994
      %v997 = vperm.slane %v971, 2
      %v998 = vperm.slane %v972, 2
      %v999 = vmul.f32 %v995, %v997
      %v1000 = vmul.f32 %v995, %v998
      %v1001 = vadd.f32 %v991, %v999
      %v1002 = vadd.f32 %v992, %v1000
      %1003 = vset.pattern.permute.xlu0 15
      %1004 = vperm.xlu0 %1003, %v269
      %v1005 = vpop.permute.xlu0 %1004
      %v1007 = vperm.slane %v971, 3
      %v1008 = vperm.slane %v972, 3
      %v1009 = vmul.f32 %v1005, %v1007
      %v1010 = vmul.f32 %v1005, %v1008
      %v1011 = vadd.f32 %v1001, %v1009
      %v1012 = vadd.f32 %v1002, %v1010
      %1013 = vset.pattern.permute.xlu0 16
      %1014 = vperm.xlu0 %1013, %v269
      %v1015 = vpop.permute.xlu0 %1014
      %v1017 = vperm.slane %v778, 0
      %v1018 = vperm.slane %v779, 0
      %v1019 = vmul.f32 %v1015, %v1017
      %v1020 = vmul.f32 %v1015, %v1018
      %v1021 = vadd.f32 %v1011, %v1019
      %v1022 = vadd.f32 %v1012, %v1020
      %1023 = vset.pattern.permute.xlu0 17
      %1024 = vperm.xlu0 %1023, %v269
      %v1025 = vpop.permute.xlu0 %1024
      %v1027 = vperm.slane %v778, 1
      %v1028 = vperm.slane %v779, 1
      %v1029 = vmul.f32 %v1025, %v1027
      %v1030 = vmul.f32 %v1025, %v1028
      %v1031 = vadd.f32 %v1021, %v1029
      %v1032 = vadd.f32 %v1022, %v1030
      %1033 = vset.pattern.permute.xlu0 18
      %1034 = vperm.xlu0 %1033, %v269
      %v1035 = vpop.permute.xlu0 %1034
      %v1037 = vperm.slane %v778, 2
      %v1038 = vperm.slane %v779, 2
      %v1039 = vmul.f32 %v1035, %v1037
      %v1040 = vmul.f32 %v1035, %v1038
      %v1041 = vadd.f32 %v1031, %v1039
      %v1042 = vadd.f32 %v1032, %v1040
      %1043 = vset.pattern.permute.xlu0 19
      %1044 = vperm.xlu0 %1043, %v269
      %v1045 = vpop.permute.xlu0 %1044
      %v1047 = vperm.slane %v778, 3
      %v1048 = vperm.slane %v779, 3
      %v1049 = vmul.f32 %v1045, %v1047
      %v1050 = vmul.f32 %v1045, %v1048
      %v1051 = vadd.f32 %v1041, %v1049
      %v1052 = vadd.f32 %v1042, %v1050
      %v1053 = vsel %vm265, %v970, %v957
      %v1054 = vsel %vm266, %v967, %v961
      %1055 = vset.pattern.permute.xlu0 20
      %1056 = vperm.xlu0 %1055, %v269
      %v1057 = vpop.permute.xlu0 %1056
      %v1059 = vperm.slane %v1053, 0
      %v1060 = vperm.slane %v1054, 0
      %v1061 = vmul.f32 %v1057, %v1059
      %v1062 = vmul.f32 %v1057, %v1060
      %v1063 = vadd.f32 %v1051, %v1061
      %v1064 = vadd.f32 %v1052, %v1062
      %1065 = vset.pattern.permute.xlu0 21
      %1066 = vperm.xlu0 %1065, %v269
      %v1067 = vpop.permute.xlu0 %1066
      %v1069 = vperm.slane %v1053, 1
      %v1070 = vperm.slane %v1054, 1
      %v1071 = vmul.f32 %v1067, %v1069
      %v1072 = vmul.f32 %v1067, %v1070
      %v1073 = vadd.f32 %v1063, %v1071
      %v1074 = vadd.f32 %v1064, %v1072
      %1075 = vset.pattern.permute.xlu0 22
      %1076 = vperm.xlu0 %1075, %v269
      %v1077 = vpop.permute.xlu0 %1076
      %v1079 = vperm.slane %v1053, 2
      %v1080 = vperm.slane %v1054, 2
      %v1081 = vmul.f32 %v1077, %v1079
      %v1082 = vmul.f32 %v1077, %v1080
      %v1083 = vadd.f32 %v1073, %v1081
      %v1084 = vadd.f32 %v1074, %v1082
      %1085 = vset.pattern.permute.xlu0 23
      %1086 = vperm.xlu0 %1085, %v269
      %v1087 = vpop.permute.xlu0 %1086
      %v1089 = vperm.slane %v1053, 3
      %v1090 = vperm.slane %v1054, 3
      %v1091 = vmul.f32 %v1087, %v1089
      %v1092 = vmul.f32 %v1087, %v1090
      %v1093 = vadd.f32 %v1083, %v1091
      %v1094 = vadd.f32 %v1084, %v1092
      %v1095 = vsel %vm261, %v805, %v792
      %v1096 = vsel %vm262, %v802, %v796
      %1099 = vrot.lane.b32.xlu0 %v1095, 127
      %v1100 = vpop.permute.xlu0 %1099
      %1101 = vrot.lane.b32.xlu0 %v1096, 127
      %v1102 = vpop.permute.xlu0 %1101
      %v1103 = vsel %vm319, %v1100, %v1102
      %v1107 = vsel %vm319, %v1102, %v1100
      %1108 = vrot.lane.b32.xlu0 %v1096, 1
      %v1109 = vpop.permute.xlu0 %1108
      %1111 = vrot.lane.b32.xlu0 %v1095, 1
      %v1112 = vpop.permute.xlu0 %1111
      %v1113 = vsel %vm330, %v1112, %v1109
      %v1116 = vsel %vm330, %v1109, %v1112
      %v1117 = vsel %vm263, %v1103, %v1116
      %v1118 = vsel %vm264, %v1107, %v1113
      %1119 = vset.pattern.permute.xlu0 24
      %1120 = vperm.xlu0 %1119, %v269
      %v1121 = vpop.permute.xlu0 %1120
      %v1123 = vperm.slane %v1117, 0
      %v1124 = vperm.slane %v1118, 0
      %v1125 = vmul.f32 %v1121, %v1123
      %v1126 = vmul.f32 %v1121, %v1124
      %v1127 = vadd.f32 %v1093, %v1125
      %v1128 = vadd.f32 %v1094, %v1126
      %1129 = vset.pattern.permute.xlu0 25
      %1130 = vperm.xlu0 %1129, %v269
      %v1131 = vpop.permute.xlu0 %1130
      %v1133 = vperm.slane %v1117, 1
      %v1134 = vperm.slane %v1118, 1
      %v1135 = vmul.f32 %v1131, %v1133
      %v1136 = vmul.f32 %v1131, %v1134
      %v1137 = vadd.f32 %v1127, %v1135
      %v1138 = vadd.f32 %v1128, %v1136
      %1139 = vset.pattern.permute.xlu0 26
      %1140 = vperm.xlu0 %1139, %v269
      %v1141 = vpop.permute.xlu0 %1140
      %v1143 = vperm.slane %v1117, 2
      %v1144 = vperm.slane %v1118, 2
      %v1145 = vmul.f32 %v1141, %v1143
      %v1146 = vmul.f32 %v1141, %v1144
      %v1147 = vadd.f32 %v1137, %v1145
      %v1148 = vadd.f32 %v1138, %v1146
      %1149 = vset.pattern.permute.xlu0 27
      %1150 = vperm.xlu0 %1149, %v269
      %v1151 = vpop.permute.xlu0 %1150
      %v1153 = vperm.slane %v1117, 3
      %v1154 = vperm.slane %v1118, 3
      %v1155 = vmul.f32 %v1151, %v1153
      %v1156 = vmul.f32 %v1151, %v1154
      %v1157 = vadd.f32 %v1147, %v1155
      %v1158 = vadd.f32 %v1148, %v1156
      %1159 = vset.pattern.permute.xlu0 28
      %1160 = vperm.xlu0 %1159, %v269
      %v1161 = vpop.permute.xlu0 %1160
      %v1163 = vperm.slane %v1095, 0
      %v1164 = vperm.slane %v1096, 0
      %v1165 = vmul.f32 %v1161, %v1163
      %v1166 = vmul.f32 %v1161, %v1164
      %v1167 = vadd.f32 %v1157, %v1165
      %v1168 = vadd.f32 %v1158, %v1166
      %1169 = vset.pattern.permute.xlu0 29
      %1170 = vperm.xlu0 %1169, %v269
      %v1171 = vpop.permute.xlu0 %1170
      %v1173 = vperm.slane %v1095, 1
      %v1174 = vperm.slane %v1096, 1
      %v1175 = vmul.f32 %v1171, %v1173
      %v1176 = vmul.f32 %v1171, %v1174
      %v1177 = vadd.f32 %v1167, %v1175
      %v1178 = vadd.f32 %v1168, %v1176
      %1179 = vset.pattern.permute.xlu0 30
      %1180 = vperm.xlu0 %1179, %v269
      %v1181 = vpop.permute.xlu0 %1180
      %v1183 = vperm.slane %v1095, 2
      %v1184 = vperm.slane %v1096, 2
      %v1185 = vmul.f32 %v1181, %v1183
      %v1186 = vmul.f32 %v1181, %v1184
      %v1187 = vadd.f32 %v1177, %v1185
      %v1188 = vadd.f32 %v1178, %v1186
      %1189 = vset.pattern.permute.xlu0 31
      %1190 = vperm.xlu0 %1189, %v269
      %v1191 = vpop.permute.xlu0 %1190
      %v1193 = vperm.slane %v1095, 3
      %v1194 = vperm.slane %v1096, 3
      %v1195 = vmul.f32 %v1191, %v1193
      %v1196 = vmul.f32 %v1191, %v1194
      %v1197 = vadd.f32 %v1187, %v1195
      %v1198 = vadd.f32 %v1188, %v1196
      %v1199 = vsel %vm265, %v1116, %v1103
      %v1200 = vsel %vm266, %v1113, %v1107
      %1201 = vset.pattern.permute.xlu0 32
      %1202 = vperm.xlu0 %1201, %v269
      %v1203 = vpop.permute.xlu0 %1202
      %v1205 = vperm.slane %v1199, 0
      %v1206 = vperm.slane %v1200, 0
      %v1207 = vmul.f32 %v1203, %v1205
      %v1208 = vmul.f32 %v1203, %v1206
      %v1209 = vadd.f32 %v1197, %v1207
      %v1210 = vadd.f32 %v1198, %v1208
      %1211 = vset.pattern.permute.xlu0 33
      %1212 = vperm.xlu0 %1211, %v269
      %v1213 = vpop.permute.xlu0 %1212
      %v1215 = vperm.slane %v1199, 1
      %v1216 = vperm.slane %v1200, 1
      %v1217 = vmul.f32 %v1213, %v1215
      %v1218 = vmul.f32 %v1213, %v1216
      %v1219 = vadd.f32 %v1209, %v1217
      %v1220 = vadd.f32 %v1210, %v1218
      %1221 = vset.pattern.permute.xlu0 34
      %1222 = vperm.xlu0 %1221, %v269
      %v1223 = vpop.permute.xlu0 %1222
      %v1225 = vperm.slane %v1199, 2
      %v1226 = vperm.slane %v1200, 2
      %v1227 = vmul.f32 %v1223, %v1225
      %v1228 = vmul.f32 %v1223, %v1226
      %v1229 = vadd.f32 %v1219, %v1227
      %v1230 = vadd.f32 %v1220, %v1228
      %1231 = vset.pattern.permute.xlu0 35
      %1232 = vperm.xlu0 %1231, %v269
      %v1233 = vpop.permute.xlu0 %1232
      %v1235 = vperm.slane %v1199, 3
      %v1236 = vperm.slane %v1200, 3
      %v1237 = vmul.f32 %v1233, %v1235
      %v1238 = vmul.f32 %v1233, %v1236
      %v1239 = vadd.f32 %v1229, %v1237
      %v1240 = vadd.f32 %v1230, %v1238
      %v1243 = vrot.slane %v1240, 4
      %vm1244 = vcmask 1043456
      %v1245 = vsel %vm1244, %v1239, %v1243
      %v1247 = vadd.f32 %v267, %v1245
      %1248 = vst [vmem:[%s251] sm:$0xff] %v1247
      %p1249 = scmp.lt.s32.totalorder %s17, 1
      %s1250 = scalar_select %p1249, %s17, 1
      %s1251 = smul.addr %s1250, 2
      %s1252 = smul.addr %s1251, 4
      %s1253 = scalar_lea.vmem %s6, %s1252
      // Predicated region
      $region45: #{resnet_block.1} parent=43 // pred_check
        %p1254 = pneg %p166
      $region46: #{resnet_block.1} parent=43 // pred_check_branch
        %1256 = sbr.rel (%p1254) target = $region48
      $region47: #{resnet_block.1} parent=43 // pred_region
        _
      $region48: #{resnet_block.1} parent=43 // pred_fallthru
        _
    $region44: #{resnet_block.1} parent=5 // pred_fallthru
      _
    %p1257 = scmp.le.s32.totalorder 2, %s12
    // Predicated region
    $region49: #{resnet_block.1} parent=5 // pred_check
      %p1258 = pneg %p1257
    $region50: #{resnet_block.1} parent=5 // pred_check_branch
      %1260 = sbr.rel (%p1258) target = $region52
    $region51: #{resnet_block.1} parent=5 // pred_region
      %s1261 = ssub.s32 %s12, 2
      // Predicated region
      $region53: #{resnet_block.1} parent=51 // pred_check
        %p1262 = pneg %p172
      $region54: #{resnet_block.1} parent=51 // pred_check_branch
        %1264 = sbr.rel (%p1262) target = $region56
      $region55: #{resnet_block.1} parent=51 // pred_region
        %p1265 = scmp.lt.s32.totalorder %s18, 1
        %s1266 = scalar_select %p1265, %s18, 1
        %s1267 = smul.addr %s1266, 2
        %s1268 = smul.addr %s1267, 4
        %s1269 = scalar_lea.vmem %s6, %s1268
      $region56: #{resnet_block.1} parent=51 // pred_fallthru
        _
    $region52: #{resnet_block.1} parent=5 // pred_fallthru
      _
  $region6: #{resnet_block.1} parent=0 // loop_footer
    %s16 = sadd.s32 1, %s12
  $region7: #{resnet_block.1} parent=0 // loop_footer_branch
    %11 = sbr.rel target = $region3
  $region8: #{resnet_block.1} parent=0 // loop_exit
    _

</llo_original>
